<compile_context>
chip_gen: v7x
topology: tpu7x:2x2x1
jax: 0.10.0
libtpu: 0.0.40
codegen_flags: <defaults>
</compile_context>

<pallas_src>
import functools

import jax
import jax.numpy as jnp
from jax import lax
from jax.experimental import pallas as pl
from jax.experimental.pallas import tpu as pltpu

NEG_SLOPE = 0.01  # nn.LeakyReLU default


# --------------------------------------------------------------------------
# Pallas kernel: fused 3x3 conv (shifted-tap GEMMs) + bias + activation
# --------------------------------------------------------------------------
def _conv3x3_kernel(x_ref, w_ref, b_ref, o_ref, acc_ref, *, tm, wp, activation):
    """One (batch, flat-spatial-tile) grid step.

    x_ref : (1, tm + 2*wp + 2, Cin) bf16  halo'd flat tile of the padded image
    w_ref : (9, Cin, Cout)          bf16  conv weights, tap-major (dy*3 + dx)
    b_ref : (1, Cout)               f32
    o_ref : (1, tm, Cout)           bf16 or f32
    acc_ref: (tm, Cout)             f32 VMEM scratch accumulator
    """
    for t in range(9):
        dy, dx = divmod(t, 3)
        off = dy * wp + dx
        contrib = jnp.dot(x_ref[0, off:off + tm, :], w_ref[t],
                          preferred_element_type=jnp.float32)
        if t == 0:
            acc_ref[...] = contrib
        else:
            acc_ref[...] += contrib
    acc = acc_ref[...] + b_ref[...]
    if activation == "leaky_relu":
        acc = jnp.where(acc >= 0, acc, NEG_SLOPE * acc)
    elif activation == "sigmoid":
        acc = jax.nn.sigmoid(acc)
    o_ref[0] = acc.astype(o_ref.dtype)


def _choose_flat_tile(m, cap):
    """Largest sublane-aligned tile <= cap that divides m (else one tile)."""
    if m <= cap:
        return m
    for d in range(cap - cap % 8, 7, -8):
        if m % d == 0:
            return d
    return m


def conv3x3_same(x, w, b, activation="none", out_dtype=jnp.bfloat16,
                 max_tile_rows=2048):
    """3x3 zero-padded 'same' conv + bias + activation, NHWC.

    x: (B, H, W, Cin)   w: (3, 3, Cin, Cout)   b: (Cout,)
    max_tile_rows: cap on flat-spatial rows per kernel step (512-2048 is the
    sweet spot on v5e/v6e; use ~half on v7x which has 64 MiB VMEM per core).
    """
    B, H, W, Cin = x.shape
    Cout = w.shape[-1]
    Wp = W + 2
    M = H * Wp                 # flat output rows (in padded-width coordinates)
    halo = 2 * Wp + 2          # extra rows a tile needs for all 9 tap offsets

    xb = x.astype(jnp.bfloat16)
    wb = w.reshape(9, Cin, Cout).astype(jnp.bfloat16)
    bb = b.reshape(1, Cout).astype(jnp.float32)

    # Pad 1 row top / 2 rows bottom (the extra bottom row only feeds the
    # discarded junk columns), 1 column left/right, then flatten spatially.
    xp = jnp.pad(xb, ((0, 0), (1, 2), (1, 1), (0, 0)))
    xf = xp.reshape(B, (H + 3) * Wp, Cin)

    tm = _choose_flat_tile(M, max_tile_rows)
    nt = M // tm
    tmh = tm + halo

    if nt == 1:
        tiles = xf[:, :tmh, :]                               # (B, tmh, Cin)
    else:
        # Halo'd tiles (duplicates only `halo` rows per tile, ~1-3% extra).
        tiles = jnp.stack(
            [xf[:, t * tm:t * tm + tmh, :] for t in range(nt)], axis=1)
        tiles = tiles.reshape(B * nt, tmh, Cin)              # (B*nt, tmh, Cin)

    kernel = functools.partial(_conv3x3_kernel, tm=tm, wp=Wp,
                               activation=activation)

    out_itemsize = jnp.dtype(out_dtype).itemsize
    cost = pl.CostEstimate(
        flops=int(2 * B * M * 9 * Cin * Cout),
        transcendentals=int(B * M * Cout) if activation == "sigmoid" else 0,
        bytes_accessed=int(tiles.size * 2 + wb.size * 2 + bb.size * 4
                           + B * M * Cout * out_itemsize),
    )

    out = pl.pallas_call(
        kernel,
        out_shape=jax.ShapeDtypeStruct((B, M, Cout), out_dtype),
        grid=(B, nt),
        in_specs=[
            pl.BlockSpec((1, tmh, Cin), lambda bi, ti: (bi * nt + ti, 0, 0)),
            pl.BlockSpec((9, Cin, Cout), lambda bi, ti: (0, 0, 0)),
            pl.BlockSpec((1, Cout), lambda bi, ti: (0, 0)),
        ],
        out_specs=pl.BlockSpec((1, tm, Cout), lambda bi, ti: (bi, ti, 0)),
        scratch_shapes=[pltpu.VMEM((tm, Cout), jnp.float32)],
        compiler_params=pltpu.CompilerParams(
            dimension_semantics=("parallel", "parallel"),
            vmem_limit_bytes=64 * 1024 * 1024),
        cost_estimate=cost,
    )(tiles, wb, bb)

    # Drop the two junk columns (padded-width coordinates) and un-flatten.
    # TODO(synk): store the two narrow head convs in (Cout, M) orientation so
    # their stores are lane-dense (at real scale Cout>=64 for all trunk convs).
    return out.reshape(B, H, Wp, Cout)[:, :, :W, :]


# --------------------------------------------------------------------------
# Glue ops (plain JAX): maxpool, bilinear upsample (gather-free)
# --------------------------------------------------------------------------
# TODO(synk): fuse maxpool into the preceding conv epilogue and the
# upsample+concat into the next conv's input tile to cut HBM round trips.
def maxpool2x2(x):
    B, H, W, C = x.shape
    return x.reshape(B, H // 2, 2, W // 2, 2, C).max(axis=(2, 4))


def _upsample2x_axis(x, axis):
    n = x.shape[axis]
    left = jnp.concatenate([lax.slice_in_dim(x, 0, 1, axis=axis),
                            lax.slice_in_dim(x, 0, n - 1, axis=axis)], axis=axis)
    right = jnp.concatenate([lax.slice_in_dim(x, 1, n, axis=axis),
                             lax.slice_in_dim(x, n - 1, n, axis=axis)], axis=axis)
    even = 0.25 * left + 0.75 * x
    odd = 0.75 * x + 0.25 * right
    out = jnp.stack([even, odd], axis=axis + 1)
    new_shape = list(x.shape)
    new_shape[axis] = 2 * n
    return out.reshape(new_shape)


def bilinear_upsample2x(x):
    # matches nn.Upsample(scale_factor=2, mode='bilinear', align_corners=False)
    return _upsample2x_axis(_upsample2x_axis(x, 1), 2)


# --------------------------------------------------------------------------
# Parameter init (deterministic, PyTorch-Conv2d-like uniform bounds)
# --------------------------------------------------------------------------
def _init_conv(key, cin, cout, k=3):
    wkey, bkey = jax.random.split(key)
    fan_in = cin * k * k
    bound = 1.0 / (fan_in ** 0.5)
    w = jax.random.uniform(wkey, (k, k, cin, cout), jnp.float32, -bound, bound)
    b = jax.random.uniform(bkey, (cout,), jnp.float32, -bound, bound)
    return w, b


# --------------------------------------------------------------------------
# CNNEncoder
# --------------------------------------------------------------------------
def build_encoder(key, input_shape, out_channels, kernel_sizes, maxpool):
    del kernel_sizes  # all 3 in this model
    cin, h, w = input_shape
    layers = []
    keys = jax.random.split(key, len(out_channels))
    for i, cout in enumerate(out_channels):
        W, B = _init_conv(keys[i], cin, cout)
        layers.append(("conv_lrelu", W, B))
        if maxpool[i]:
            layers.append(("maxpool", maxpool[i]))
            h //= maxpool[i]
            w //= maxpool[i]
        cin = cout
    return layers, (out_channels[-1], h, w)


def encoder_forward(layers, x):
    x_cat = []
    for layer in layers:
        if layer[0] == "maxpool":
            x_cat.append(x)
            x = maxpool2x2(x)
        else:
            _, W, B = layer
            x = conv3x3_same(x, W, B, activation="leaky_relu")
    return x, x_cat


# --------------------------------------------------------------------------
# CNNDecoder
# --------------------------------------------------------------------------
def build_decoder(key, input_shape, out_channels, kernel_sizes, upsample):
    del kernel_sizes  # all 3 in this model
    cin, h, w = input_shape
    cin *= 2
    layers = []
    keys = jax.random.split(key, len(out_channels))
    for i in range(len(out_channels)):
        if upsample[i]:
            layers.append(("upsample", upsample[i]))
            h *= upsample[i]
            w *= upsample[i]
        if i + 1 < len(out_channels) and upsample[i + 1]:
            cout = out_channels[i] // 2
        else:
            cout = out_channels[i]
        W, B = _init_conv(keys[i], cin, cout)
        layers.append(("conv_lrelu", W, B))
        cin = out_channels[i]
    return layers


def decoder_forward(layers, x, x_cat):
    x_cat = list(x_cat)  # shallow copy, like x_cat.copy() in torch
    for layer in layers:
        if layer[0] == "upsample":
            x = bilinear_upsample2x(x)
            x = jnp.concatenate([x, x_cat.pop()], axis=-1)  # channel cat (NHWC)
        else:
            _, W, B = layer
            x = conv3x3_same(x, W, B, activation="leaky_relu")
    return x


# --------------------------------------------------------------------------
# GenWeakSegNet (forward only; the loss functions are not part of forward)
# --------------------------------------------------------------------------
def build_gen_weak_seg_net(key, input_shape=(3, 16, 16), num_classes=2,
                           base_channels=(8, 8, 16, 16, 32, 32, 64, 64),
                           bottleneck_channels=(128, 64)):
    out_channels = list(base_channels)
    kernel_sizes = [3] * len(out_channels)
    maxpool = [0, 2, 0, 2, 0, 2, 0, 2]

    enc_key, dimg_key, dmask_key, oimg_key, omask_key = jax.random.split(key, 5)
    enc_layers, enc_out_shape = build_encoder(
        enc_key, input_shape, out_channels + list(bottleneck_channels),
        kernel_sizes + [3, 3], maxpool + [0, 0])

    dec_out = out_channels[::-1]
    dec_k = kernel_sizes[::-1]
    dec_up = maxpool[::-1]
    dec_img = build_decoder(dimg_key, enc_out_shape, dec_out, dec_k, dec_up)
    dec_mask = build_decoder(dmask_key, enc_out_shape, dec_out, dec_k, dec_up)

    op_img = _init_conv(oimg_key, dec_out[-1], 3 * num_classes)
    op_mask = _init_conv(omask_key, dec_out[-1], num_classes)

    return dict(enc=enc_layers, dec_img=dec_img, dec_mask=dec_mask,
                op_img=op_img, op_mask=op_mask,
                input_shape=input_shape, num_classes=num_classes)


def gen_weak_seg_net_forward(params, x_nchw):
    num_classes = params["num_classes"]
    cin, Hin, Win = params["input_shape"]
    x = jnp.transpose(x_nchw, (0, 2, 3, 1))  # NCHW -> NHWC
    x, x_cat = encoder_forward(params["enc"], x)
    B = x.shape[0]

    x_img = decoder_forward(params["dec_img"], x, x_cat)
    # op_cls_img conv + sigmoid (sigmoid fused into the Pallas kernel; f32 out)
    y_img = conv3x3_same(x_img, *params["op_img"], activation="sigmoid",
                         out_dtype=jnp.float32)
    y_img = jnp.transpose(y_img, (0, 3, 1, 2)).reshape(B, num_classes, cin, Hin, Win)

    x_mask = decoder_forward(params["dec_mask"], x, x_cat)
    y_mask = conv3x3_same(x_mask, *params["op_mask"], activation="none",
                          out_dtype=jnp.float32)
    y_mask = jnp.transpose(y_mask, (0, 3, 1, 2))
    return y_img, y_mask


# TODO(synk): loss_fn (ReconLoss / MaskRegLoss / ClsGuideLoss + frozen
# classifier) is not part of forward() and is not implemented here.


if __name__ == "__main__":
    key = jax.random.PRNGKey(0)
    xkey, pkey, ckey = jax.random.split(key, 3)

    # --- standalone check of the fused conv kernel (exercises the tiled path,
    #     nt > 1) against an XLA reference on the same bf16-rounded inputs.
    cxk, cwk, cbk = jax.random.split(ckey, 3)
    xt = jax.random.normal(cxk, (1, 20, 20, 8), jnp.float32)
    wt = jax.random.normal(cwk, (3, 3, 8, 16), jnp.float32) * 0.1
    bt = jax.random.normal(cbk, (16,), jnp.float32) * 0.1
    got = conv3x3_same(xt, wt, bt, activation="leaky_relu",
                       out_dtype=jnp.float32, max_tile_rows=88)
    xr = xt.astype(jnp.bfloat16).astype(jnp.float32)
    wr = wt.astype(jnp.bfloat16).astype(jnp.float32)
    ref = lax.conv_general_dilated(
        xr, wr, window_strides=(1, 1), padding="SAME",
        dimension_numbers=("NHWC", "HWIO", "NHWC"),
        precision=lax.Precision.HIGHEST) + bt
    ref = jnp.where(ref >= 0, ref, NEG_SLOPE * ref)
    err = float(jnp.max(jnp.abs(got - ref)))
    assert err < 1e-2, f"conv3x3 kernel mismatch, max abs err = {err}"

    # --- full GenWeakSegNet forward at small shapes ------------------------
    B, num_classes = 2, 2
    input_shape = (3, 16, 16)  # scaled-down stand-in for (3, 224, 224)
    x = jax.random.normal(xkey, (B,) + input_shape, jnp.float32)

    params = build_gen_weak_seg_net(pkey, input_shape=input_shape,
                                    num_classes=num_classes)

    fwd = jax.jit(functools.partial(gen_weak_seg_net_forward, params))
    y_img, y_mask = fwd(x)
    jax.block_until_ready((y_img, y_mask))

    assert y_img.shape == (B, num_classes) + input_shape, y_img.shape
    assert y_mask.shape == (B, num_classes, input_shape[1], input_shape[2]), y_mask.shape
    assert bool(jnp.all(y_img >= 0) & jnp.all(y_img <= 1))
    assert bool(jnp.all(jnp.isfinite(y_mask)))
    print("KERNEL_OK")
</pallas_src>

<mosaic_0001>
module attributes {stable_mosaic.version = 11 : i64} {
  func.func @_conv3x3_kernel(%arg0: i32, %arg1: i32, %arg2: memref<1x134x8xbf16, #tpu.memory_space<vmem>>, %arg3: memref<9x8x16xbf16, #tpu.memory_space<vmem>>, %arg4: memref<1x16xf32, #tpu.memory_space<vmem>>, %arg5: memref<1x88x16xf32, #tpu.memory_space<vmem>>, %arg6: memref<88x16xf32, #tpu.memory_space<vmem>>) attributes {dimension_semantics = [#tpu.dimension_semantics<parallel>, #tpu.dimension_semantics<parallel>], iteration_bounds = array<i64: 1, 5>, scalar_prefetch = 0 : i64, scratch_operands = 1 : i64, tpu.core_type = #tpu.core_type<tc>, window_params = [{transform_indices = @transform_0, window_bounds = array<i64: 1, 134, 8>}, {pipeline_mode = #tpu.pipeline_mode<synchronous>, transform_indices = @transform_1, window_bounds = array<i64: 9, 8, 16>}, {pipeline_mode = #tpu.pipeline_mode<synchronous>, transform_indices = @transform_2, window_bounds = array<i64: 1, 16>}, {transform_indices = @transform_3, window_bounds = array<i64: 1, 88, 16>}]} {
    %c0 = arith.constant 0 : index
    %c0_0 = arith.constant 0 : index
    %c0_1 = arith.constant 0 : index
    %0 = vector.load %arg2[%c0, %c0_0, %c0_1] : memref<1x134x8xbf16, #tpu.memory_space<vmem>>, vector<1x88x8xbf16>
    %1 = vector.shape_cast %0 : vector<1x88x8xbf16> to vector<88x8xbf16>
    %c0_2 = arith.constant 0 : index
    %c0_3 = arith.constant 0 : index
    %c0_4 = arith.constant 0 : index
    %2 = vector.load %arg3[%c0_2, %c0_3, %c0_4] : memref<9x8x16xbf16, #tpu.memory_space<vmem>>, vector<1x8x16xbf16>
    %3 = vector.shape_cast %2 : vector<1x8x16xbf16> to vector<8x16xbf16>
    %cst = arith.constant dense<0.000000e+00> : vector<88x16xf32>
    %4 = tpu.matmul %1, %3, %cst {dimension_numbers = #tpu.dot_dimension_numbers<[1], [0], [0], [1], [0, 0, 1, 1], [], []>} : vector<88x8xbf16>, vector<8x16xbf16>, vector<88x16xf32> -> vector<88x16xf32>
    %c0_5 = arith.constant 0 : index
    %c0_6 = arith.constant 0 : index
    %5 = vector.load %arg6[%c0_5, %c0_6] : memref<88x16xf32, #tpu.memory_space<vmem>>, vector<88x16xf32>
    tpu.vector_store %arg6[%c0_5, %c0_6], %4 {strides = array<i32>} : memref<88x16xf32, #tpu.memory_space<vmem>>, vector<88x16xf32>,
    %c0_7 = arith.constant 0 : index
    %c1 = arith.constant 1 : index
    %c0_8 = arith.constant 0 : index
    %6 = vector.load %arg2[%c0_7, %c1, %c0_8] : memref<1x134x8xbf16, #tpu.memory_space<vmem>>, vector<1x88x8xbf16>
    %7 = vector.shape_cast %6 : vector<1x88x8xbf16> to vector<88x8xbf16>
    %c1_9 = arith.constant 1 : index
    %c0_10 = arith.constant 0 : index
    %c0_11 = arith.constant 0 : index
    %8 = vector.load %arg3[%c1_9, %c0_10, %c0_11] : memref<9x8x16xbf16, #tpu.memory_space<vmem>>, vector<1x8x16xbf16>
    %9 = vector.shape_cast %8 : vector<1x8x16xbf16> to vector<8x16xbf16>
    %cst_12 = arith.constant dense<0.000000e+00> : vector<88x16xf32>
    %10 = tpu.matmul %7, %9, %cst_12 {dimension_numbers = #tpu.dot_dimension_numbers<[1], [0], [0], [1], [0, 0, 1, 1], [], []>} : vector<88x8xbf16>, vector<8x16xbf16>, vector<88x16xf32> -> vector<88x16xf32>
    %c0_13 = arith.constant 0 : index
    %c0_14 = arith.constant 0 : index
    %11 = vector.load %arg6[%c0_13, %c0_14] : memref<88x16xf32, #tpu.memory_space<vmem>>, vector<88x16xf32>
    %12 = arith.addf %11, %10 : vector<88x16xf32>
    %c0_15 = arith.constant 0 : index
    %c0_16 = arith.constant 0 : index
    %13 = vector.load %arg6[%c0_15, %c0_16] : memref<88x16xf32, #tpu.memory_space<vmem>>, vector<88x16xf32>
    tpu.vector_store %arg6[%c0_15, %c0_16], %12 {strides = array<i32>} : memref<88x16xf32, #tpu.memory_space<vmem>>, vector<88x16xf32>,
    %c0_17 = arith.constant 0 : index
    %c2 = arith.constant 2 : index
    %c0_18 = arith.constant 0 : index
    %14 = vector.load %arg2[%c0_17, %c2, %c0_18] : memref<1x134x8xbf16, #tpu.memory_space<vmem>>, vector<1x88x8xbf16>
    %15 = vector.shape_cast %14 : vector<1x88x8xbf16> to vector<88x8xbf16>
    %c2_19 = arith.constant 2 : index
    %c0_20 = arith.constant 0 : index
    %c0_21 = arith.constant 0 : index
    %16 = vector.load %arg3[%c2_19, %c0_20, %c0_21] : memref<9x8x16xbf16, #tpu.memory_space<vmem>>, vector<1x8x16xbf16>
    %17 = vector.shape_cast %16 : vector<1x8x16xbf16> to vector<8x16xbf16>
    %cst_22 = arith.constant dense<0.000000e+00> : vector<88x16xf32>
    %18 = tpu.matmul %15, %17, %cst_22 {dimension_numbers = #tpu.dot_dimension_numbers<[1], [0], [0], [1], [0, 0, 1, 1], [], []>} : vector<88x8xbf16>, vector<8x16xbf16>, vector<88x16xf32> -> vector<88x16xf32>
    %c0_23 = arith.constant 0 : index
    %c0_24 = arith.constant 0 : index
    %19 = vector.load %arg6[%c0_23, %c0_24] : memref<88x16xf32, #tpu.memory_space<vmem>>, vector<88x16xf32>
    %20 = arith.addf %19, %18 : vector<88x16xf32>
    %c0_25 = arith.constant 0 : index
    %c0_26 = arith.constant 0 : index
    %21 = vector.load %arg6[%c0_25, %c0_26] : memref<88x16xf32, #tpu.memory_space<vmem>>, vector<88x16xf32>
    tpu.vector_store %arg6[%c0_25, %c0_26], %20 {strides = array<i32>} : memref<88x16xf32, #tpu.memory_space<vmem>>, vector<88x16xf32>,
    %c0_27 = arith.constant 0 : index
    %c22 = arith.constant 22 : index
    %c0_28 = arith.constant 0 : index
    %22 = vector.load %arg2[%c0_27, %c22, %c0_28] : memref<1x134x8xbf16, #tpu.memory_space<vmem>>, vector<1x88x8xbf16>
    %23 = vector.shape_cast %22 : vector<1x88x8xbf16> to vector<88x8xbf16>
    %c3 = arith.constant 3 : index
    %c0_29 = arith.constant 0 : index
    %c0_30 = arith.constant 0 : index
    %24 = vector.load %arg3[%c3, %c0_29, %c0_30] : memref<9x8x16xbf16, #tpu.memory_space<vmem>>, vector<1x8x16xbf16>
    %25 = vector.shape_cast %24 : vector<1x8x16xbf16> to vector<8x16xbf16>
    %cst_31 = arith.constant dense<0.000000e+00> : vector<88x16xf32>
    %26 = tpu.matmul %23, %25, %cst_31 {dimension_numbers = #tpu.dot_dimension_numbers<[1], [0], [0], [1], [0, 0, 1, 1], [], []>} : vector<88x8xbf16>, vector<8x16xbf16>, vector<88x16xf32> -> vector<88x16xf32>
    %c0_32 = arith.constant 0 : index
    %c0_33 = arith.constant 0 : index
    %27 = vector.load %arg6[%c0_32, %c0_33] : memref<88x16xf32, #tpu.memory_space<vmem>>, vector<88x16xf32>
    %28 = arith.addf %27, %26 : vector<88x16xf32>
    %c0_34 = arith.constant 0 : index
    %c0_35 = arith.constant 0 : index
    %29 = vector.load %arg6[%c0_34, %c0_35] : memref<88x16xf32, #tpu.memory_space<vmem>>, vector<88x16xf32>
    tpu.vector_store %arg6[%c0_34, %c0_35], %28 {strides = array<i32>} : memref<88x16xf32, #tpu.memory_space<vmem>>, vector<88x16xf32>,
    %c0_36 = arith.constant 0 : index
    %c23 = arith.constant 23 : index
    %c0_37 = arith.constant 0 : index
    %30 = vector.load %arg2[%c0_36, %c23, %c0_37] : memref<1x134x8xbf16, #tpu.memory_space<vmem>>, vector<1x88x8xbf16>
    %31 = vector.shape_cast %30 : vector<1x88x8xbf16> to vector<88x8xbf16>
    %c4 = arith.constant 4 : index
    %c0_38 = arith.constant 0 : index
    %c0_39 = arith.constant 0 : index
    %32 = vector.load %arg3[%c4, %c0_38, %c0_39] : memref<9x8x16xbf16, #tpu.memory_space<vmem>>, vector<1x8x16xbf16>
    %33 = vector.shape_cast %32 : vector<1x8x16xbf16> to vector<8x16xbf16>
    %cst_40 = arith.constant dense<0.000000e+00> : vector<88x16xf32>
    %34 = tpu.matmul %31, %33, %cst_40 {dimension_numbers = #tpu.dot_dimension_numbers<[1], [0], [0], [1], [0, 0, 1, 1], [], []>} : vector<88x8xbf16>, vector<8x16xbf16>, vector<88x16xf32> -> vector<88x16xf32>
    %c0_41 = arith.constant 0 : index
    %c0_42 = arith.constant 0 : index
    %35 = vector.load %arg6[%c0_41, %c0_42] : memref<88x16xf32, #tpu.memory_space<vmem>>, vector<88x16xf32>
    %36 = arith.addf %35, %34 : vector<88x16xf32>
    %c0_43 = arith.constant 0 : index
    %c0_44 = arith.constant 0 : index
    %37 = vector.load %arg6[%c0_43, %c0_44] : memref<88x16xf32, #tpu.memory_space<vmem>>, vector<88x16xf32>
    tpu.vector_store %arg6[%c0_43, %c0_44], %36 {strides = array<i32>} : memref<88x16xf32, #tpu.memory_space<vmem>>, vector<88x16xf32>,
    %c0_45 = arith.constant 0 : index
    %c24 = arith.constant 24 : index
    %c0_46 = arith.constant 0 : index
    %38 = vector.load %arg2[%c0_45, %c24, %c0_46] : memref<1x134x8xbf16, #tpu.memory_space<vmem>>, vector<1x88x8xbf16>
    %39 = vector.shape_cast %38 : vector<1x88x8xbf16> to vector<88x8xbf16>
    %c5 = arith.constant 5 : index
    %c0_47 = arith.constant 0 : index
    %c0_48 = arith.constant 0 : index
    %40 = vector.load %arg3[%c5, %c0_47, %c0_48] : memref<9x8x16xbf16, #tpu.memory_space<vmem>>, vector<1x8x16xbf16>
    %41 = vector.shape_cast %40 : vector<1x8x16xbf16> to vector<8x16xbf16>
    %cst_49 = arith.constant dense<0.000000e+00> : vector<88x16xf32>
    %42 = tpu.matmul %39, %41, %cst_49 {dimension_numbers = #tpu.dot_dimension_numbers<[1], [0], [0], [1], [0, 0, 1, 1], [], []>} : vector<88x8xbf16>, vector<8x16xbf16>, vector<88x16xf32> -> vector<88x16xf32>
    %c0_50 = arith.constant 0 : index
    %c0_51 = arith.constant 0 : index
    %43 = vector.load %arg6[%c0_50, %c0_51] : memref<88x16xf32, #tpu.memory_space<vmem>>, vector<88x16xf32>
    %44 = arith.addf %43, %42 : vector<88x16xf32>
    %c0_52 = arith.constant 0 : index
    %c0_53 = arith.constant 0 : index
    %45 = vector.load %arg6[%c0_52, %c0_53] : memref<88x16xf32, #tpu.memory_space<vmem>>, vector<88x16xf32>
    tpu.vector_store %arg6[%c0_52, %c0_53], %44 {strides = array<i32>} : memref<88x16xf32, #tpu.memory_space<vmem>>, vector<88x16xf32>,
    %c0_54 = arith.constant 0 : index
    %c44 = arith.constant 44 : index
    %c0_55 = arith.constant 0 : index
    %46 = vector.load %arg2[%c0_54, %c44, %c0_55] : memref<1x134x8xbf16, #tpu.memory_space<vmem>>, vector<1x88x8xbf16>
    %47 = vector.shape_cast %46 : vector<1x88x8xbf16> to vector<88x8xbf16>
    %c6 = arith.constant 6 : index
    %c0_56 = arith.constant 0 : index
    %c0_57 = arith.constant 0 : index
    %48 = vector.load %arg3[%c6, %c0_56, %c0_57] : memref<9x8x16xbf16, #tpu.memory_space<vmem>>, vector<1x8x16xbf16>
    %49 = vector.shape_cast %48 : vector<1x8x16xbf16> to vector<8x16xbf16>
    %cst_58 = arith.constant dense<0.000000e+00> : vector<88x16xf32>
    %50 = tpu.matmul %47, %49, %cst_58 {dimension_numbers = #tpu.dot_dimension_numbers<[1], [0], [0], [1], [0, 0, 1, 1], [], []>} : vector<88x8xbf16>, vector<8x16xbf16>, vector<88x16xf32> -> vector<88x16xf32>
    %c0_59 = arith.constant 0 : index
    %c0_60 = arith.constant 0 : index
    %51 = vector.load %arg6[%c0_59, %c0_60] : memref<88x16xf32, #tpu.memory_space<vmem>>, vector<88x16xf32>
    %52 = arith.addf %51, %50 : vector<88x16xf32>
    %c0_61 = arith.constant 0 : index
    %c0_62 = arith.constant 0 : index
    %53 = vector.load %arg6[%c0_61, %c0_62] : memref<88x16xf32, #tpu.memory_space<vmem>>, vector<88x16xf32>
    tpu.vector_store %arg6[%c0_61, %c0_62], %52 {strides = array<i32>} : memref<88x16xf32, #tpu.memory_space<vmem>>, vector<88x16xf32>,
    %c0_63 = arith.constant 0 : index
    %c45 = arith.constant 45 : index
    %c0_64 = arith.constant 0 : index
    %54 = vector.load %arg2[%c0_63, %c45, %c0_64] : memref<1x134x8xbf16, #tpu.memory_space<vmem>>, vector<1x88x8xbf16>
    %55 = vector.shape_cast %54 : vector<1x88x8xbf16> to vector<88x8xbf16>
    %c7 = arith.constant 7 : index
    %c0_65 = arith.constant 0 : index
    %c0_66 = arith.constant 0 : index
    %56 = vector.load %arg3[%c7, %c0_65, %c0_66] : memref<9x8x16xbf16, #tpu.memory_space<vmem>>, vector<1x8x16xbf16>
    %57 = vector.shape_cast %56 : vector<1x8x16xbf16> to vector<8x16xbf16>
    %cst_67 = arith.constant dense<0.000000e+00> : vector<88x16xf32>
    %58 = tpu.matmul %55, %57, %cst_67 {dimension_numbers = #tpu.dot_dimension_numbers<[1], [0], [0], [1], [0, 0, 1, 1], [], []>} : vector<88x8xbf16>, vector<8x16xbf16>, vector<88x16xf32> -> vector<88x16xf32>
    %c0_68 = arith.constant 0 : index
    %c0_69 = arith.constant 0 : index
    %59 = vector.load %arg6[%c0_68, %c0_69] : memref<88x16xf32, #tpu.memory_space<vmem>>, vector<88x16xf32>
    %60 = arith.addf %59, %58 : vector<88x16xf32>
    %c0_70 = arith.constant 0 : index
    %c0_71 = arith.constant 0 : index
    %61 = vector.load %arg6[%c0_70, %c0_71] : memref<88x16xf32, #tpu.memory_space<vmem>>, vector<88x16xf32>
    tpu.vector_store %arg6[%c0_70, %c0_71], %60 {strides = array<i32>} : memref<88x16xf32, #tpu.memory_space<vmem>>, vector<88x16xf32>,
    %c0_72 = arith.constant 0 : index
    %c46 = arith.constant 46 : index
    %c0_73 = arith.constant 0 : index
    %62 = vector.load %arg2[%c0_72, %c46, %c0_73] : memref<1x134x8xbf16, #tpu.memory_space<vmem>>, vector<1x88x8xbf16>
    %63 = vector.shape_cast %62 : vector<1x88x8xbf16> to vector<88x8xbf16>
    %c8 = arith.constant 8 : index
    %c0_74 = arith.constant 0 : index
    %c0_75 = arith.constant 0 : index
    %64 = vector.load %arg3[%c8, %c0_74, %c0_75] : memref<9x8x16xbf16, #tpu.memory_space<vmem>>, vector<1x8x16xbf16>
    %65 = vector.shape_cast %64 : vector<1x8x16xbf16> to vector<8x16xbf16>
    %cst_76 = arith.constant dense<0.000000e+00> : vector<88x16xf32>
    %66 = tpu.matmul %63, %65, %cst_76 {dimension_numbers = #tpu.dot_dimension_numbers<[1], [0], [0], [1], [0, 0, 1, 1], [], []>} : vector<88x8xbf16>, vector<8x16xbf16>, vector<88x16xf32> -> vector<88x16xf32>
    %c0_77 = arith.constant 0 : index
    %c0_78 = arith.constant 0 : index
    %67 = vector.load %arg6[%c0_77, %c0_78] : memref<88x16xf32, #tpu.memory_space<vmem>>, vector<88x16xf32>
    %68 = arith.addf %67, %66 : vector<88x16xf32>
    %c0_79 = arith.constant 0 : index
    %c0_80 = arith.constant 0 : index
    %69 = vector.load %arg6[%c0_79, %c0_80] : memref<88x16xf32, #tpu.memory_space<vmem>>, vector<88x16xf32>
    tpu.vector_store %arg6[%c0_79, %c0_80], %68 {strides = array<i32>} : memref<88x16xf32, #tpu.memory_space<vmem>>, vector<88x16xf32>,
    %c0_81 = arith.constant 0 : index
    %c0_82 = arith.constant 0 : index
    %70 = vector.load %arg6[%c0_81, %c0_82] : memref<88x16xf32, #tpu.memory_space<vmem>>, vector<88x16xf32>
    %c0_83 = arith.constant 0 : index
    %c0_84 = arith.constant 0 : index
    %71 = vector.load %arg4[%c0_83, %c0_84] : memref<1x16xf32, #tpu.memory_space<vmem>>, vector<1x16xf32>
    %72 = vector.broadcast %71 : vector<1x16xf32> to vector<88x16xf32>
    %73 = arith.addf %70, %72 : vector<88x16xf32>
    %cst_85 = arith.constant 0.000000e+00 : f32
    %74 = vector.broadcast %cst_85 : f32 to vector<88x16xf32>
    %75 = arith.cmpf oge, %73, %74 : vector<88x16xf32>
    %cst_86 = arith.constant 0.00999999977 : f32
    %76 = vector.broadcast %cst_86 : f32 to vector<88x16xf32>
    %77 = arith.mulf %76, %73 : vector<88x16xf32>
    %78 = arith.select %75, %73, %77 : vector<88x16xi1>, vector<88x16xf32>
    %c0_87 = arith.constant 0 : index
    %c0_88 = arith.constant 0 : index
    %c0_89 = arith.constant 0 : index
    %79 = vector.load %arg5[%c0_87, %c0_88, %c0_89] : memref<1x88x16xf32, #tpu.memory_space<vmem>>, vector<1x88x16xf32>
    %80 = vector.shape_cast %79 : vector<1x88x16xf32> to vector<88x16xf32>
    %81 = vector.shape_cast %78 : vector<88x16xf32> to vector<1x88x16xf32>
    tpu.vector_store %arg5[%c0_87, %c0_88, %c0_89], %81 {strides = array<i32>} : memref<1x88x16xf32, #tpu.memory_space<vmem>>, vector<1x88x16xf32>,
    return
  }
  func.func @transform_0(%arg0: i32, %arg1: i32) -> (i32, i32, i32) {
    %c5_i32 = arith.constant 5 : i32
    %0 = arith.muli %arg0, %c5_i32 : i32
    %1 = arith.addi %0, %arg1 : i32
    %c0_i32 = arith.constant 0 : i32
    %c0_i32_0 = arith.constant 0 : i32
    %c0_i32_1 = arith.constant 0 : i32
    return %1, %c0_i32, %c0_i32_0 : i32, i32, i32
  }
  func.func @transform_1(%arg0: i32, %arg1: i32) -> (i32, i32, i32) {
    %c0_i32 = arith.constant 0 : i32
    %c0_i32_0 = arith.constant 0 : i32
    %c0_i32_1 = arith.constant 0 : i32
    %c0_i32_2 = arith.constant 0 : i32
    return %c0_i32, %c0_i32_0, %c0_i32_1 : i32, i32, i32
  }
  func.func @transform_2(%arg0: i32, %arg1: i32) -> (i32, i32) {
    %c0_i32 = arith.constant 0 : i32
    %c0_i32_0 = arith.constant 0 : i32
    %c0_i32_1 = arith.constant 0 : i32
    return %c0_i32, %c0_i32_0 : i32, i32
  }
  func.func @transform_3(%arg0: i32, %arg1: i32) -> (i32, i32, i32) {
    %c0_i32 = arith.constant 0 : i32
    %c0_i32_0 = arith.constant 0 : i32
    return %arg0, %arg1, %c0_i32 : i32, i32, i32
  }
}

</mosaic_0001>

<llo_original>
// kernel: tpu_custom_call.1
$region0: #{tpu_custom_call.1}
  #allocation0 [shape = 'u32[]', space=smem, size = 0x4, offset = 0x4, fixed_abs, tag = 'smem constant byte address 0x4 - core index']
  #allocation1 [shape = 'u32[144,128]{1,0:T(1,128)}', space=vmem, size = 0x12000, scoped, tag = 'internal scratch']
  #allocation2 [shape = 'f32[88,16]{1,0:T(8,128)}', space=vmem, size = 0xb000, scoped, tag = 'scratch operand']
  %s0 = inlined_call_operand.hbm [shape: bf16[5,134,8], index: 0, kind: input, shape index: {}]
  %s1 = inlined_call_operand.hbm [shape: bf16[9,8,16], index: 1, kind: input, shape index: {}]
  %s2 = inlined_call_operand.hbm [shape: f32[1,16], index: 2, kind: input, shape index: {}]
  %s3 = inlined_call_operand.hbm [shape: f32[1,440,16], index: 3, kind: output, shape index: {}]
  %s4 = sld [smem:[#allocation0]]
  $region57: #{tpu_custom_call.1} parent=0
    _
  %s6 = ssub.s32 1, %s4
  %s7 = scalar_select 0, %s6, %s4
  $region1: #{tpu_custom_call.1} parent=0
    #allocation3 [shape = 'u8[69632]{0}', space=vmem, size = 0x11000, scoped, tag = 'input window, operand 0']
    #allocation4 [shape = 's32[2]{0}', space=sflag, size = 0x8, scoped, tag = 'scoped memory for tpu_custom_call.1']
    #allocation5 [shape = 's32[2]{0}', space=sflag, size = 0x8, scoped, tag = 'scoped memory for tpu_custom_call.1']
    #allocation6 [shape = 'u8[18432]{0}', space=vmem, size = 0x4800, scoped, tag = 'input window, operand 1, single buffered']
    #allocation7 [shape = 's32[1]{0}', space=sflag, size = 0x4, scoped, tag = 'scoped memory for tpu_custom_call.1']
    #allocation8 [shape = 'u8[512]{0}', space=vmem, size = 0x400, scoped, tag = 'input window, operand 2, single buffered']
    #allocation9 [shape = 'u8[90112]{0}', space=vmem, size = 0x16000, scoped, tag = 'output window, operand 0']
    %8 = vsyncpa [#allocation4], 0
    %s9 = scalar_lea.sflag [#allocation4], 1
    %10 = vsyncpa %s9, 0
    %11 = vsyncpa [#allocation7], 0
    %12 = vsyncpa [#allocation5], 0
    %s13 = scalar_lea.sflag [#allocation5], 1
    %14 = vsyncpa %s13, 0
    loop: start=0, step=1, limit=7
    $region2: #{tpu_custom_call.1} parent=1 // loop_pre_header
      _
    $region3: #{tpu_custom_call.1} parent=1 // loop_header
      %s16 = sphi 0, %s20
      %p17 = scmp.ge.s32.totalorder %s16, 7
      %s23 = sphi 0, %s35
      %s24 = sphi 0, %s31
      %s25 = sphi 0, %s23
      %s26 = sphi 0, %s24
      %s27 = sphi 0, %s25
      %s28 = sphi 0, %s26
      %s42 = sphi 0, %s44
      %s45 = sphi 0, %s42
      %s46 = sphi 0, %s45
      %s62 = sphi 0, %s46
      %s66 = sphi 0, %s66
      %s68 = sphi 0, %s66
      %s69 = sphi 0, %s68
      %s83 = sphi 0, %s69
      %s87 = sphi 0, %s87
      %s89 = sphi 0, %s87
      %s90 = sphi 0, %s89
      %s104 = sphi 0, %s90
      %s112 = sphi 0, %s114
      %s115 = sphi 0, %s112
      %s116 = sphi 0, %s115
      %s132 = sphi 0, %s116
    $region4: #{tpu_custom_call.1} parent=1 // loop_header_branch
      %19 = sbr.rel (%p17) target = $region8
    $region5: #{tpu_custom_call.1} parent=1 // loop_body
      %s21 = ssub.s32 %s16, 1
      %s22 = ssub.s32 %s16, 2
      %s29 = sadd.s32 1, %s24
      %p30 = scmp.ge.s32.totalorder %s29, 5
      %s31 = scalar_select %p30, 0, %s29
      %s32 = sadd.s32 1, %s23
      %s33 = scalar_select %p30, %s32, %s23
      %p34 = scmp.ge.s32.totalorder %s33, 1
      %s35 = scalar_select %p34, 0, %s33
      %s36 = smul.u32 %s23, 5
      %s37 = sadd.s32 %s36, %s24
      %s38 = smul.u32 %s35, 5
      %s39 = sadd.s32 %s38, %s31
      %s40 = ssub.s32 %s37, %s39
      %p41 = scmp.eq.s32.totalorder %s40, 0
      %s43 = sadd.s32 %s42, 1
      %s44 = scalar_select %p41, %s42, %s43
      %p47 = pneg %p41
      %p48 = scmp.eq.s32.totalorder %s16, 4
      %p49 = por %p47, %p48
      %p50 = scmp.ne.s32.totalorder %s42, %s45
      %p51 = scmp.eq.s32.totalorder %s16, 0
      %p52 = por %p50, %p51
      %p53 = scmp.ne.s32.totalorder %s42, %s45
      %p54 = scmp.eq.s32.totalorder %s21, 4
      %p55 = por %p53, %p54
      %p56 = scmp.ne.s32.totalorder %s45, %s46
      %p57 = scmp.eq.s32.totalorder %s21, 0
      %p58 = por %p56, %p57
      %p59 = scmp.ne.s32.totalorder %s45, %s46
      %p60 = scmp.eq.s32.totalorder %s22, 4
      %p61 = por %p59, %p60
      %p63 = scmp.ne.s32.totalorder %s46, %s62
      %p64 = scmp.eq.s32.totalorder %s22, 0
      %p65 = por %p63, %p64
      %s67 = sadd.s32 %s66, 1
      %p70 = scmp.eq.s32.totalorder %s16, 4
      %p71 = scmp.ne.s32.totalorder %s66, %s68
      %p72 = scmp.eq.s32.totalorder %s16, 0
      %p73 = por %p71, %p72
      %p74 = scmp.ne.s32.totalorder %s66, %s68
      %p75 = scmp.eq.s32.totalorder %s21, 4
      %p76 = por %p74, %p75
      %p77 = scmp.ne.s32.totalorder %s68, %s69
      %p78 = scmp.eq.s32.totalorder %s21, 0
      %p79 = por %p77, %p78
      %p80 = scmp.ne.s32.totalorder %s68, %s69
      %p81 = scmp.eq.s32.totalorder %s22, 4
      %p82 = por %p80, %p81
      %p84 = scmp.ne.s32.totalorder %s69, %s83
      %p85 = scmp.eq.s32.totalorder %s22, 0
      %p86 = por %p84, %p85
      %s88 = sadd.s32 %s87, 1
      %p91 = scmp.eq.s32.totalorder %s16, 4
      %p92 = scmp.ne.s32.totalorder %s87, %s89
      %p93 = scmp.eq.s32.totalorder %s16, 0
      %p94 = por %p92, %p93
      %p95 = scmp.ne.s32.totalorder %s87, %s89
      %p96 = scmp.eq.s32.totalorder %s21, 4
      %p97 = por %p95, %p96
      %p98 = scmp.ne.s32.totalorder %s89, %s90
      %p99 = scmp.eq.s32.totalorder %s21, 0
      %p100 = por %p98, %p99
      %p101 = scmp.ne.s32.totalorder %s89, %s90
      %p102 = scmp.eq.s32.totalorder %s22, 4
      %p103 = por %p101, %p102
      %p105 = scmp.ne.s32.totalorder %s90, %s104
      %p106 = scmp.eq.s32.totalorder %s22, 0
      %p107 = por %p105, %p106
      %s108 = ssub.s32 %s23, %s35
      %s109 = ssub.s32 %s24, %s31
      %s110 = sor.u32 %s108, %s109
      %p111 = scmp.eq.s32.totalorder %s110, 0
      %s113 = sadd.s32 %s112, 1
      %s114 = scalar_select %p111, %s112, %s113
      %p117 = pneg %p111
      %p118 = scmp.eq.s32.totalorder %s16, 4
      %p119 = por %p117, %p118
      %p120 = scmp.ne.s32.totalorder %s112, %s115
      %p121 = scmp.eq.s32.totalorder %s16, 0
      %p122 = por %p120, %p121
      %p123 = scmp.ne.s32.totalorder %s112, %s115
      %p124 = scmp.eq.s32.totalorder %s21, 4
      %p125 = por %p123, %p124
      %p126 = scmp.ne.s32.totalorder %s115, %s116
      %p127 = scmp.eq.s32.totalorder %s21, 0
      %p128 = por %p126, %p127
      %p129 = scmp.ne.s32.totalorder %s115, %s116
      %p130 = scmp.eq.s32.totalorder %s22, 4
      %p131 = por %p129, %p130
      %p133 = scmp.ne.s32.totalorder %s116, %s132
      %p134 = scmp.eq.s32.totalorder %s22, 0
      %p135 = por %p133, %p134
      %p136 = scmp.le.s32.totalorder 1, %s16
      %p137 = scmp.lt.s32.totalorder %s16, 6
      %p138 = pnand %p136, %p137
      %p139 = pneg %p138
      // Predicated region
      $region9: #{tpu_custom_call.1} parent=5 // pred_check
        _
      $region10: #{tpu_custom_call.1} parent=5 // pred_check_branch
        %141 = sbr.rel (%p138) target = $region12
      $region11: #{tpu_custom_call.1} parent=5 // pred_region
        %s142 = ssub.s32 %s16, 1
        // Predicated region
        $region13: #{tpu_custom_call.1} parent=11 // pred_check
          %p143 = pneg %p79
        $region14: #{tpu_custom_call.1} parent=11 // pred_check_branch
          %145 = sbr.rel (%p143) target = $region16
        $region15: #{tpu_custom_call.1} parent=11 // pred_region
          %s147 = ssub.s32 576, 576
          %148 = vsyncadd [#allocation7], %s147
          %s149 = sshll.u32 [#allocation6], 4
          %s150 = int_to_ptr.vmem [resolvable:$true] %s149
          %155 = dma.hbm_to_vmem [thread:$0]  %s1, 576, %s150, [#allocation7], 64, 64, 4
        $region16: #{tpu_custom_call.1} parent=11 // pred_fallthru
          _
        // Predicated region
        $region17: #{tpu_custom_call.1} parent=11 // pred_check
          %p156 = pneg %p100
        $region18: #{tpu_custom_call.1} parent=11 // pred_check_branch
          %158 = sbr.rel (%p156) target = $region20
        $region19: #{tpu_custom_call.1} parent=11 // pred_region
          %s160 = ssub.s32 16, 16
          %161 = vsyncadd [#allocation7], %s160
          %s163 = sshll.u32 [#allocation8], 4
          %s164 = int_to_ptr.vmem [resolvable:$true] %s163
          %166 = dma.hbm_to_vmem [thread:$0]  %s2, 16, %s164, [#allocation7]
        $region20: #{tpu_custom_call.1} parent=11 // pred_fallthru
          _
      $region12: #{tpu_custom_call.1} parent=5 // pred_fallthru
        _
      %p167 = scmp.lt.s32.totalorder %s16, 5
      // Predicated region
      $region21: #{tpu_custom_call.1} parent=5 // pred_check
        %p168 = pneg %p167
      $region22: #{tpu_custom_call.1} parent=5 // pred_check_branch
        %170 = sbr.rel (%p168) target = $region24
      $region23: #{tpu_custom_call.1} parent=5 // pred_region
        // Predicated region
        $region25: #{tpu_custom_call.1} parent=23 // pred_check
          %p171 = pneg %p52
        $region26: #{tpu_custom_call.1} parent=23 // pred_check_branch
          %173 = sbr.rel (%p171) target = $region28
        $region27: #{tpu_custom_call.1} parent=23 // pred_region
          %s174 = sand.u32 %s42, 1
          %s175 = scalar_lea.sflag [#allocation4], %s174
          %s176 = sand.u32 %s42, 1
          %s177 = smul.addr %s176, 68
          %s178 = scalar_lea.vmem [#allocation3], %s177
          %s179 = smul.u32 %s23, 5
          %s180 = sadd.s32 %s179, %s24
          %s182 = ssub.s32 1088, 1088
          %183 = vsyncadd %s175, %s182
          %s184 = smul.addr %s180, 17
          %s185 = smul.addr %s184, 64
          %s186 = scalar_lea.hbm %s0, %s185
          %s187 = sshll.u32 %s178, 4
          %s188 = int_to_ptr.vmem [resolvable:$true] %s187
          %193 = dma.hbm_to_vmem [thread:$0]  %s186, 1088, %s188, %s175, 64, 64, 4
        $region28: #{tpu_custom_call.1} parent=23 // pred_fallthru
          _
      $region24: #{tpu_custom_call.1} parent=5 // pred_fallthru
        _
      %p194 = scmp.le.s32.totalorder 1, %s16
      %p195 = scmp.lt.s32.totalorder %s16, 6
      %p196 = pnand %p194, %p195
      %p197 = pneg %p196
      // Predicated region
      $region29: #{tpu_custom_call.1} parent=5 // pred_check
        _
      $region30: #{tpu_custom_call.1} parent=5 // pred_check_branch
        %199 = sbr.rel (%p196) target = $region32
      $region31: #{tpu_custom_call.1} parent=5 // pred_region
        %s200 = ssub.s32 %s16, 1
        %s201 = sand.u32 %s45, 1
        %s202 = scalar_lea.sflag [#allocation4], %s201
        %s203 = sand.u32 %s45, 1
        %s204 = smul.addr %s203, 68
        %s205 = scalar_lea.vmem [#allocation3], %s204
        // Predicated region
        $region33: #{tpu_custom_call.1} parent=31 // pred_check
          %p206 = pneg %p58
        $region34: #{tpu_custom_call.1} parent=31 // pred_check_branch
          %208 = sbr.rel (%p206) target = $region36
        $region35: #{tpu_custom_call.1} parent=31 // pred_region
          %209 = dma.done %s202, 1088
        $region36: #{tpu_custom_call.1} parent=31 // pred_fallthru
          _
        // Predicated region
        $region37: #{tpu_custom_call.1} parent=31 // pred_check
          %p210 = pneg %p79
        $region38: #{tpu_custom_call.1} parent=31 // pred_check_branch
          %212 = sbr.rel (%p210) target = $region40
        $region39: #{tpu_custom_call.1} parent=31 // pred_region
          %213 = dma.done [#allocation7], 576
        $region40: #{tpu_custom_call.1} parent=31 // pred_fallthru
          _
        // Predicated region
        $region41: #{tpu_custom_call.1} parent=31 // pred_check
          %p214 = pneg %p100
        $region42: #{tpu_custom_call.1} parent=31 // pred_check_branch
          %216 = sbr.rel (%p214) target = $region44
        $region43: #{tpu_custom_call.1} parent=31 // pred_region
          %217 = dma.done [#allocation7], 16
        $region44: #{tpu_custom_call.1} parent=31 // pred_fallthru
          _
        %s218 = sand.u32 %s45, 1
        %s219 = scalar_lea.sflag [#allocation4], %s218
        %s220 = sand.u32 %s45, 1
        %s221 = smul.addr %s220, 68
        %s222 = scalar_lea.vmem [#allocation3], %s221
        %p223 = pneg %p58
        %p224 = pneg %p55
        %p225 = pneg %p79
        %p226 = pneg %p76
        %p227 = pneg %p100
        %p228 = pneg %p97
        %p229 = pneg %p128
        %p230 = pneg %p125
        %s231 = sand.u32 %s115, 1
        %s232 = scalar_lea.sflag [#allocation5], %s231
        %s233 = sand.u32 %s115, 1
        %s234 = smul.addr %s233, 88
        %s235 = scalar_lea.vmem [#allocation9], %s234
        %s236 = smul.u32 %s25, 5
        %s237 = sadd.s32 %s236, %s26
        %s238 = smul.u32 11, %s26
        %v240 = vld [vmem:[%s205] sm:$0xf]
        %v241 = vld [vmem:[%s205 + $0x4] sm:$0xf]
        %v242 = vld [vmem:[%s205 + $0x8] sm:$0xf]
        %v243 = vld [vmem:[%s205 + $0xc] sm:$0xf]
        %v244 = vld [vmem:[%s205 + $0x10] sm:$0xf]
        %v245 = vld [vmem:[%s205 + $0x14] sm:$0xf]
        %v246 = vld [vmem:[%s205 + $0x18] sm:$0xf]
        %v247 = vld [vmem:[%s205 + $0x1c] sm:$0xf]
        %v248 = vld [vmem:[%s205 + $0x20] sm:$0xf]
        %v249 = vld [vmem:[%s205 + $0x24] sm:$0xf]
        %v250 = vld [vmem:[%s205 + $0x28] sm:$0xf]
        %v251 = vld [vmem:[#allocation6] sm:$0xf]
        %v263 = vunpack.c.l.b16 %v240
        %v264 = vunpack.c.l.b16 %v241
        %v265 = vunpack.c.l.b16 %v242
        %v266 = vunpack.c.l.b16 %v243
        %v267 = vunpack.c.l.b16 %v244
        %v268 = vunpack.c.l.b16 %v245
        %v269 = vunpack.c.l.b16 %v246
        %v270 = vunpack.c.l.b16 %v247
        %v271 = vunpack.c.l.b16 %v248
        %v272 = vunpack.c.l.b16 %v249
        %v273 = vunpack.c.l.b16 %v250
        %v274 = vpack.c.b16 %v264, %v263
        %v275 = vpack.c.b16 %v266, %v265
        %v276 = vpack.c.b16 %v268, %v267
        %v277 = vpack.c.b16 %v270, %v269
        %v278 = vpack.c.b16 %v272, %v271
        %v279 = vpack.c.b16 %v273, %v273
        %vm280 = vcmask 64512
        %v282 = vsel %vm280, %v274, 0
        %v285 = vsel %vm280, %v275, 0
        %v288 = vsel %vm280, %v276, 0
        %v291 = vsel %vm280, %v277, 0
        %v294 = vsel %vm280, %v278, 0
        %v297 = vsel %vm280, %v279, 0
        %vm299 = vcmask 1043456
        %v301 = vsel %vm299, %v251, 0
        %303 = vmatprep.subr.bf16.mxu0 0
        %304 = vmatpush1.bf16.msra.mxu0 %v301
        %305 = vmatprep.subr.bf16.mxu0 0
        %306 = vmatpush1.bf16.msra.mxu0 0
        %307 = vmatprep.subr.bf16.mxu0 0
        %308 = vmatpush1.bf16.msra.mxu0 0
        %309 = vmatprep.subr.bf16.mxu0 0
        %310 = vmatpush1.bf16.msra.mxu0 0
        %311 = vmatprep.subr.bf16.mxu0 0
        %312 = vmatpush1.bf16.msra.mxu0 0
        %313 = vmatprep.subr.bf16.mxu0 0
        %314 = vmatpush1.bf16.msra.mxu0 0
        %315 = vmatprep.subr.bf16.mxu0 0
        %316 = vmatpush1.bf16.msra.mxu0 0
        %317 = vmatprep.subr.bf16.mxu0 0
        %318 = vmatpush1.bf16.msra.mxu0 0
        %319 = vmatprep.subr.bf16.mxu0 0
        %320 = vmatpush1.bf16.msra.mxu0 0
        %321 = vmatprep.subr.bf16.mxu0 0
        %322 = vmatpush1.bf16.msra.mxu0 0
        %323 = vmatprep.subr.bf16.mxu0 0
        %324 = vmatpush1.bf16.msra.mxu0 0
        %325 = vmatprep.subr.bf16.mxu0 0
        %326 = vmatpush1.bf16.msra.mxu0 0
        %327 = vmatprep.subr.bf16.mxu0 0
        %328 = vmatpush1.bf16.msra.mxu0 0
        %329 = vmatprep.subr.bf16.mxu0 0
        %330 = vmatpush1.bf16.msra.mxu0 0
        %331 = vmatprep.subr.bf16.mxu0 0
        %332 = vmatpush1.bf16.msra.mxu0 0
        %333 = vmatprep.subr.bf16.mxu0 0
        %334 = vmatpush1.bf16.msra.mxu0 0
        %335 = vmatprep.mubr.bf16.mxu0 0
        %336 = vmatmul.mubr.bf16.gmra.mrb[0].mxu0 %v282
        %v337 = vpop.f32.mrb[0].mxu0
        %v338 = vadd.f32 0.0, %v337
        %v339 = vpop.f32.mrb[0].mxu0
        %v340 = vpop.f32.mrb[0].mxu0
        %v341 = vadd.f32 0.0, %v340
        %v342 = vpop.f32.mrb[0].mxu0
        %343 = vmatprep.mubr.bf16.mxu0 0
        %344 = vmatmul.mubr.bf16.gmra.mrb[0].mxu0 %v285
        %v345 = vpop.f32.mrb[0].mxu0
        %v346 = vadd.f32 0.0, %v345
        %v347 = vpop.f32.mrb[0].mxu0
        %v348 = vpop.f32.mrb[0].mxu0
        %v349 = vadd.f32 0.0, %v348
        %v350 = vpop.f32.mrb[0].mxu0
        %351 = vmatprep.mubr.bf16.mxu0 0
        %352 = vmatmul.mubr.bf16.gmra.mrb[0].mxu0 %v288
        %v353 = vpop.f32.mrb[0].mxu0
        %v354 = vadd.f32 0.0, %v353
        %v355 = vpop.f32.mrb[0].mxu0
        %v356 = vpop.f32.mrb[0].mxu0
        %v357 = vadd.f32 0.0, %v356
        %v358 = vpop.f32.mrb[0].mxu0
        %359 = vmatprep.mubr.bf16.mxu0 0
        %360 = vmatmul.mubr.bf16.gmra.mrb[0].mxu0 %v291
        %v361 = vpop.f32.mrb[0].mxu0
        %v362 = vadd.f32 0.0, %v361
        %v363 = vpop.f32.mrb[0].mxu0
        %v364 = vpop.f32.mrb[0].mxu0
        %v365 = vadd.f32 0.0, %v364
        %v366 = vpop.f32.mrb[0].mxu0
        %367 = vmatprep.mubr.bf16.mxu0 0
        %368 = vmatmul.mubr.bf16.gmra.mrb[0].mxu0 %v294
        %v369 = vpop.f32.mrb[0].mxu0
        %v370 = vadd.f32 0.0, %v369
        %v371 = vpop.f32.mrb[0].mxu0
        %v372 = vpop.f32.mrb[0].mxu0
        %v373 = vadd.f32 0.0, %v372
        %v374 = vpop.f32.mrb[0].mxu0
        %375 = vmatprep.mubr.bf16.mxu0 0
        %376 = vmatmul.mubr.bf16.gmra.mrb[0].mxu0 %v297
        %v377 = vpop.f32.mrb[0].mxu0
        %v378 = vadd.f32 0.0, %v377
        %v379 = vpop.f32.mrb[0].mxu0
        %v380 = vpop.f32.mrb[0].mxu0
        %v381 = vpop.f32.mrb[0].mxu0
        %382 = vdwg.mxu0
        %vm383 = vcmask 130048
        %384 = vst.msk [vmem:[#allocation2] sm:$0xff] %vm383, %v338
        %385 = vst.msk [vmem:[#allocation2 + $0x8] sm:$0xff] %vm383, %v341
        %386 = vst.msk [vmem:[#allocation2 + $0x10] sm:$0xff] %vm383, %v346
        %387 = vst.msk [vmem:[#allocation2 + $0x18] sm:$0xff] %vm383, %v349
        %388 = vst.msk [vmem:[#allocation2 + $0x20] sm:$0xff] %vm383, %v354
        %389 = vst.msk [vmem:[#allocation2 + $0x28] sm:$0xff] %vm383, %v357
        %390 = vst.msk [vmem:[#allocation2 + $0x30] sm:$0xff] %vm383, %v362
        %391 = vst.msk [vmem:[#allocation2 + $0x38] sm:$0xff] %vm383, %v365
        %392 = vst.msk [vmem:[#allocation2 + $0x40] sm:$0xff] %vm383, %v370
        %393 = vst.msk [vmem:[#allocation2 + $0x48] sm:$0xff] %vm383, %v373
        %394 = vst.msk [vmem:[#allocation2 + $0x50] sm:$0xff] %vm383, %v378
        %v395 = vld [vmem:[%s205] sm:$0xf]
        %v396 = vld [vmem:[%s205 + $0x4] sm:$0xf]
        %v397 = vld [vmem:[%s205 + $0x8] sm:$0xf]
        %v398 = vld [vmem:[%s205 + $0xc] sm:$0xf]
        %v399 = vld [vmem:[%s205 + $0x10] sm:$0xf]
        %v400 = vld [vmem:[%s205 + $0x14] sm:$0xf]
        %v401 = vld [vmem:[%s205 + $0x18] sm:$0xf]
        %v402 = vld [vmem:[%s205 + $0x1c] sm:$0xf]
        %v403 = vld [vmem:[%s205 + $0x20] sm:$0xf]
        %v404 = vld [vmem:[%s205 + $0x24] sm:$0xf]
        %v405 = vld [vmem:[%s205 + $0x28] sm:$0xf]
        %v406 = vld [vmem:[%s205 + $0x2c] sm:$0x1]
        %s407 = scalar_lea.vmem [#allocation6], 4
        %v408 = vld [vmem:[%s407] sm:$0xf]
        %v421 = vunpack.c.l.b16 %v395
        %v422 = vunpack.c.l.b16 %v396
        %v423 = vunpack.c.l.b16 %v397
        %v424 = vunpack.c.l.b16 %v398
        %v425 = vunpack.c.l.b16 %v399
        %v426 = vunpack.c.l.b16 %v400
        %v427 = vunpack.c.l.b16 %v401
        %v428 = vunpack.c.l.b16 %v402
        %v429 = vunpack.c.l.b16 %v403
        %v430 = vunpack.c.l.b16 %v404
        %v431 = vunpack.c.l.b16 %v405
        %v432 = vunpack.c.l.b16 %v406
        %v433 = vpack.c.b16 %v422, %v421
        %v434 = vpack.c.b16 %v424, %v423
        %v435 = vpack.c.b16 %v426, %v425
        %v436 = vpack.c.b16 %v428, %v427
        %v437 = vpack.c.b16 %v430, %v429
        %v438 = vpack.c.b16 %v432, %v431
        %vm439 = vsmask.f32 7424
        %v441 = vshrl.u32 %v433, 16
        %v443 = vshll.u32 %v433, 16
        %v445 = vrot.slane %v443, 1
        %v446 = vor.u32 %v441, %v445
        %v448 = vshll.u32 %v434, 16
        %v450 = vrot.slane %v448, 1
        %v451 = vsel %vm439, %v446, %v450
        %v452 = vshrl.u32 %v434, 16
        %v454 = vor.u32 %v452, %v450
        %v456 = vshll.u32 %v435, 16
        %v458 = vrot.slane %v456, 1
        %v459 = vsel %vm439, %v454, %v458
        %v460 = vshrl.u32 %v435, 16
        %v462 = vor.u32 %v460, %v458
        %v464 = vshll.u32 %v436, 16
        %v466 = vrot.slane %v464, 1
        %v467 = vsel %vm439, %v462, %v466
        %v468 = vshrl.u32 %v436, 16
        %v470 = vor.u32 %v468, %v466
        %v472 = vshll.u32 %v437, 16
        %v474 = vrot.slane %v472, 1
        %v475 = vsel %vm439, %v470, %v474
        %v476 = vshrl.u32 %v437, 16
        %v478 = vor.u32 %v476, %v474
        %v480 = vshll.u32 %v438, 16
        %v482 = vrot.slane %v480, 1
        %v483 = vsel %vm439, %v478, %v482
        %v484 = vshrl.u32 %v438, 16
        %v486 = vor.u32 %v484, %v482
        %v488 = vsel %vm280, %v451, 0
        %v491 = vsel %vm280, %v459, 0
        %v494 = vsel %vm280, %v467, 0
        %v497 = vsel %vm280, %v475, 0
        %v500 = vsel %vm280, %v483, 0
        %v503 = vsel %vm280, %v486, 0
        %v506 = vsel %vm299, %v408, 0
        %508 = vmatprep.subr.bf16.mxu0 0
        %509 = vmatpush1.bf16.msra.mxu0 %v506
        %510 = vmatprep.subr.bf16.mxu0 0
        %511 = vmatpush1.bf16.msra.mxu0 0
        %512 = vmatprep.subr.bf16.mxu0 0
        %513 = vmatpush1.bf16.msra.mxu0 0
        %514 = vmatprep.subr.bf16.mxu0 0
        %515 = vmatpush1.bf16.msra.mxu0 0
        %516 = vmatprep.subr.bf16.mxu0 0
        %517 = vmatpush1.bf16.msra.mxu0 0
        %518 = vmatprep.subr.bf16.mxu0 0
        %519 = vmatpush1.bf16.msra.mxu0 0
        %520 = vmatprep.subr.bf16.mxu0 0
        %521 = vmatpush1.bf16.msra.mxu0 0
        %522 = vmatprep.subr.bf16.mxu0 0
        %523 = vmatpush1.bf16.msra.mxu0 0
        %524 = vmatprep.subr.bf16.mxu0 0
        %525 = vmatpush1.bf16.msra.mxu0 0
        %526 = vmatprep.subr.bf16.mxu0 0
        %527 = vmatpush1.bf16.msra.mxu0 0
        %528 = vmatprep.subr.bf16.mxu0 0
        %529 = vmatpush1.bf16.msra.mxu0 0
        %530 = vmatprep.subr.bf16.mxu0 0
        %531 = vmatpush1.bf16.msra.mxu0 0
        %532 = vmatprep.subr.bf16.mxu0 0
        %533 = vmatpush1.bf16.msra.mxu0 0
        %534 = vmatprep.subr.bf16.mxu0 0
        %535 = vmatpush1.bf16.msra.mxu0 0
        %536 = vmatprep.subr.bf16.mxu0 0
        %537 = vmatpush1.bf16.msra.mxu0 0
        %538 = vmatprep.subr.bf16.mxu0 0
        %539 = vmatpush1.bf16.msra.mxu0 0
        %540 = vmatprep.mubr.bf16.mxu0 0
        %541 = vmatmul.mubr.bf16.gmra.mrb[0].mxu0 %v488
        %v542 = vpop.f32.mrb[0].mxu0
        %v543 = vadd.f32 0.0, %v542
        %v544 = vpop.f32.mrb[0].mxu0
        %v545 = vpop.f32.mrb[0].mxu0
        %v546 = vadd.f32 0.0, %v545
        %v547 = vpop.f32.mrb[0].mxu0
        %548 = vmatprep.mubr.bf16.mxu0 0
        %549 = vmatmul.mubr.bf16.gmra.mrb[0].mxu0 %v491
        %v550 = vpop.f32.mrb[0].mxu0
        %v551 = vadd.f32 0.0, %v550
        %v552 = vpop.f32.mrb[0].mxu0
        %v553 = vpop.f32.mrb[0].mxu0
        %v554 = vadd.f32 0.0, %v553
        %v555 = vpop.f32.mrb[0].mxu0
        %556 = vmatprep.mubr.bf16.mxu0 0
        %557 = vmatmul.mubr.bf16.gmra.mrb[0].mxu0 %v494
        %v558 = vpop.f32.mrb[0].mxu0
        %v559 = vadd.f32 0.0, %v558
        %v560 = vpop.f32.mrb[0].mxu0
        %v561 = vpop.f32.mrb[0].mxu0
        %v562 = vadd.f32 0.0, %v561
        %v563 = vpop.f32.mrb[0].mxu0
        %564 = vmatprep.mubr.bf16.mxu0 0
        %565 = vmatmul.mubr.bf16.gmra.mrb[0].mxu0 %v497
        %v566 = vpop.f32.mrb[0].mxu0
        %v567 = vadd.f32 0.0, %v566
        %v568 = vpop.f32.mrb[0].mxu0
        %v569 = vpop.f32.mrb[0].mxu0
        %v570 = vadd.f32 0.0, %v569
        %v571 = vpop.f32.mrb[0].mxu0
        %572 = vmatprep.mubr.bf16.mxu0 0
        %573 = vmatmul.mubr.bf16.gmra.mrb[0].mxu0 %v500
        %v574 = vpop.f32.mrb[0].mxu0
        %v575 = vadd.f32 0.0, %v574
        %v576 = vpop.f32.mrb[0].mxu0
        %v577 = vpop.f32.mrb[0].mxu0
        %v578 = vadd.f32 0.0, %v577
        %v579 = vpop.f32.mrb[0].mxu0
        %580 = vmatprep.mubr.bf16.mxu0 0
        %581 = vmatmul.mubr.bf16.gmra.mrb[0].mxu0 %v503
        %v582 = vpop.f32.mrb[0].mxu0
        %v583 = vadd.f32 0.0, %v582
        %v584 = vpop.f32.mrb[0].mxu0
        %v585 = vpop.f32.mrb[0].mxu0
        %v586 = vpop.f32.mrb[0].mxu0
        %587 = vdwg.mxu0
        %v588 = vld [vmem:[#allocation2] sm:$0xff]
        %v589 = vld [vmem:[#allocation2 + $0x8] sm:$0xff]
        %v590 = vld [vmem:[#allocation2 + $0x10] sm:$0xff]
        %v591 = vld [vmem:[#allocation2 + $0x18] sm:$0xff]
        %v592 = vld [vmem:[#allocation2 + $0x20] sm:$0xff]
        %v593 = vld [vmem:[#allocation2 + $0x28] sm:$0xff]
        %v594 = vld [vmem:[#allocation2 + $0x30] sm:$0xff]
        %v595 = vld [vmem:[#allocation2 + $0x38] sm:$0xff]
        %v596 = vld [vmem:[#allocation2 + $0x40] sm:$0xff]
        %v597 = vld [vmem:[#allocation2 + $0x48] sm:$0xff]
        %v598 = vld [vmem:[#allocation2 + $0x50] sm:$0xff]
        %v599 = vadd.f32 %v588, %v543
        %v600 = vadd.f32 %v589, %v546
        %v601 = vadd.f32 %v590, %v551
        %v602 = vadd.f32 %v591, %v554
        %v603 = vadd.f32 %v592, %v559
        %v604 = vadd.f32 %v593, %v562
        %v605 = vadd.f32 %v594, %v567
        %v606 = vadd.f32 %v595, %v570
        %v607 = vadd.f32 %v596, %v575
        %v608 = vadd.f32 %v597, %v578
        %v609 = vadd.f32 %v598, %v583
        %610 = vst.msk [vmem:[#allocation2] sm:$0xff] %vm383, %v599
        %611 = vst.msk [vmem:[#allocation2 + $0x8] sm:$0xff] %vm383, %v600
        %612 = vst.msk [vmem:[#allocation2 + $0x10] sm:$0xff] %vm383, %v601
        %613 = vst.msk [vmem:[#allocation2 + $0x18] sm:$0xff] %vm383, %v602
        %614 = vst.msk [vmem:[#allocation2 + $0x20] sm:$0xff] %vm383, %v603
        %615 = vst.msk [vmem:[#allocation2 + $0x28] sm:$0xff] %vm383, %v604
        %616 = vst.msk [vmem:[#allocation2 + $0x30] sm:$0xff] %vm383, %v605
        %617 = vst.msk [vmem:[#allocation2 + $0x38] sm:$0xff] %vm383, %v606
        %618 = vst.msk [vmem:[#allocation2 + $0x40] sm:$0xff] %vm383, %v607
        %619 = vst.msk [vmem:[#allocation2 + $0x48] sm:$0xff] %vm383, %v608
        %620 = vst.msk [vmem:[#allocation2 + $0x50] sm:$0xff] %vm383, %v609
        %v621 = vld [vmem:[%s205] sm:$0xe]
        %v622 = vld [vmem:[%s205 + $0x4] sm:$0xf]
        %v623 = vld [vmem:[%s205 + $0x8] sm:$0xf]
        %v624 = vld [vmem:[%s205 + $0xc] sm:$0xf]
        %v625 = vld [vmem:[%s205 + $0x10] sm:$0xf]
        %v626 = vld [vmem:[%s205 + $0x14] sm:$0xf]
        %v627 = vld [vmem:[%s205 + $0x18] sm:$0xf]
        %v628 = vld [vmem:[%s205 + $0x1c] sm:$0xf]
        %v629 = vld [vmem:[%s205 + $0x20] sm:$0xf]
        %v630 = vld [vmem:[%s205 + $0x24] sm:$0xf]
        %v631 = vld [vmem:[%s205 + $0x28] sm:$0xf]
        %v632 = vld [vmem:[%s205 + $0x2c] sm:$0x1]
        %s633 = scalar_lea.vmem [#allocation6], 8
        %v634 = vld [vmem:[%s633] sm:$0xf]
        %v647 = vunpack.c.l.b16 %v621
        %v648 = vunpack.c.l.b16 %v622
        %v649 = vunpack.c.l.b16 %v623
        %v650 = vunpack.c.l.b16 %v624
        %v651 = vunpack.c.l.b16 %v625
        %v652 = vunpack.c.l.b16 %v626
        %v653 = vunpack.c.l.b16 %v627
        %v654 = vunpack.c.l.b16 %v628
        %v655 = vunpack.c.l.b16 %v629
        %v656 = vunpack.c.l.b16 %v630
        %v657 = vunpack.c.l.b16 %v631
        %v658 = vunpack.c.l.b16 %v632
        %v659 = vpack.c.b16 %v648, %v647
        %v660 = vpack.c.b16 %v650, %v649
        %v661 = vpack.c.b16 %v652, %v651
        %v662 = vpack.c.b16 %v654, %v653
        %v663 = vpack.c.b16 %v656, %v655
        %v664 = vpack.c.b16 %v658, %v657
        %vm665 = vcmask 1046528
        %v666 = vrot.slane %v659, 1
        %v667 = vrot.slane %v660, 1
        %v668 = vsel %vm665, %v666, %v667
        %v669 = vrot.slane %v661, 1
        %v670 = vsel %vm665, %v667, %v669
        %v671 = vrot.slane %v662, 1
        %v672 = vsel %vm665, %v669, %v671
        %v673 = vrot.slane %v663, 1
        %v674 = vsel %vm665, %v671, %v673
        %v675 = vrot.slane %v664, 1
        %v676 = vsel %vm665, %v673, %v675
        %v678 = vsel %vm280, %v668, 0
        %v681 = vsel %vm280, %v670, 0
        %v684 = vsel %vm280, %v672, 0
        %v687 = vsel %vm280, %v674, 0
        %v690 = vsel %vm280, %v676, 0
        %v693 = vsel %vm280, %v675, 0
        %v696 = vsel %vm299, %v634, 0
        %698 = vmatprep.subr.bf16.mxu0 0
        %699 = vmatpush1.bf16.msra.mxu0 %v696
        %700 = vmatprep.subr.bf16.mxu0 0
        %701 = vmatpush1.bf16.msra.mxu0 0
        %702 = vmatprep.subr.bf16.mxu0 0
        %703 = vmatpush1.bf16.msra.mxu0 0
        %704 = vmatprep.subr.bf16.mxu0 0
        %705 = vmatpush1.bf16.msra.mxu0 0
        %706 = vmatprep.subr.bf16.mxu0 0
        %707 = vmatpush1.bf16.msra.mxu0 0
        %708 = vmatprep.subr.bf16.mxu0 0
        %709 = vmatpush1.bf16.msra.mxu0 0
        %710 = vmatprep.subr.bf16.mxu0 0
        %711 = vmatpush1.bf16.msra.mxu0 0
        %712 = vmatprep.subr.bf16.mxu0 0
        %713 = vmatpush1.bf16.msra.mxu0 0
        %714 = vmatprep.subr.bf16.mxu0 0
        %715 = vmatpush1.bf16.msra.mxu0 0
        %716 = vmatprep.subr.bf16.mxu0 0
        %717 = vmatpush1.bf16.msra.mxu0 0
        %718 = vmatprep.subr.bf16.mxu0 0
        %719 = vmatpush1.bf16.msra.mxu0 0
        %720 = vmatprep.subr.bf16.mxu0 0
        %721 = vmatpush1.bf16.msra.mxu0 0
        %722 = vmatprep.subr.bf16.mxu0 0
        %723 = vmatpush1.bf16.msra.mxu0 0
        %724 = vmatprep.subr.bf16.mxu0 0
        %725 = vmatpush1.bf16.msra.mxu0 0
        %726 = vmatprep.subr.bf16.mxu0 0
        %727 = vmatpush1.bf16.msra.mxu0 0
        %728 = vmatprep.subr.bf16.mxu0 0
        %729 = vmatpush1.bf16.msra.mxu0 0
        %730 = vmatprep.mubr.bf16.mxu0 0
        %731 = vmatmul.mubr.bf16.gmra.mrb[0].mxu0 %v678
        %v732 = vpop.f32.mrb[0].mxu0
        %v733 = vadd.f32 0.0, %v732
        %v734 = vpop.f32.mrb[0].mxu0
        %v735 = vpop.f32.mrb[0].mxu0
        %v736 = vadd.f32 0.0, %v735
        %v737 = vpop.f32.mrb[0].mxu0
        %738 = vmatprep.mubr.bf16.mxu0 0
        %739 = vmatmul.mubr.bf16.gmra.mrb[0].mxu0 %v681
        %v740 = vpop.f32.mrb[0].mxu0
        %v741 = vadd.f32 0.0, %v740
        %v742 = vpop.f32.mrb[0].mxu0
        %v743 = vpop.f32.mrb[0].mxu0
        %v744 = vadd.f32 0.0, %v743
        %v745 = vpop.f32.mrb[0].mxu0
        %746 = vmatprep.mubr.bf16.mxu0 0
        %747 = vmatmul.mubr.bf16.gmra.mrb[0].mxu0 %v684
        %v748 = vpop.f32.mrb[0].mxu0
        %v749 = vadd.f32 0.0, %v748
        %v750 = vpop.f32.mrb[0].mxu0
        %v751 = vpop.f32.mrb[0].mxu0
        %v752 = vadd.f32 0.0, %v751
        %v753 = vpop.f32.mrb[0].mxu0
        %754 = vmatprep.mubr.bf16.mxu0 0
        %755 = vmatmul.mubr.bf16.gmra.mrb[0].mxu0 %v687
        %v756 = vpop.f32.mrb[0].mxu0
        %v757 = vadd.f32 0.0, %v756
        %v758 = vpop.f32.mrb[0].mxu0
        %v759 = vpop.f32.mrb[0].mxu0
        %v760 = vadd.f32 0.0, %v759
        %v761 = vpop.f32.mrb[0].mxu0
        %762 = vmatprep.mubr.bf16.mxu0 0
        %763 = vmatmul.mubr.bf16.gmra.mrb[0].mxu0 %v690
        %v764 = vpop.f32.mrb[0].mxu0
        %v765 = vadd.f32 0.0, %v764
        %v766 = vpop.f32.mrb[0].mxu0
        %v767 = vpop.f32.mrb[0].mxu0
        %v768 = vadd.f32 0.0, %v767
        %v769 = vpop.f32.mrb[0].mxu0
        %770 = vmatprep.mubr.bf16.mxu0 0
        %771 = vmatmul.mubr.bf16.gmra.mrb[0].mxu0 %v693
        %v772 = vpop.f32.mrb[0].mxu0
        %v773 = vadd.f32 0.0, %v772
        %v774 = vpop.f32.mrb[0].mxu0
        %v775 = vpop.f32.mrb[0].mxu0
        %v776 = vpop.f32.mrb[0].mxu0
        %777 = vdwg.mxu0
        %v778 = vld [vmem:[#allocation2] sm:$0xff]
        %v779 = vld [vmem:[#allocation2 + $0x8] sm:$0xff]
        %v780 = vld [vmem:[#allocation2 + $0x10] sm:$0xff]
        %v781 = vld [vmem:[#allocation2 + $0x18] sm:$0xff]
        %v782 = vld [vmem:[#allocation2 + $0x20] sm:$0xff]
        %v783 = vld [vmem:[#allocation2 + $0x28] sm:$0xff]
        %v784 = vld [vmem:[#allocation2 + $0x30] sm:$0xff]
        %v785 = vld [vmem:[#allocation2 + $0x38] sm:$0xff]
        %v786 = vld [vmem:[#allocation2 + $0x40] sm:$0xff]
        %v787 = vld [vmem:[#allocation2 + $0x48] sm:$0xff]
        %v788 = vld [vmem:[#allocation2 + $0x50] sm:$0xff]
        %v789 = vadd.f32 %v778, %v733
        %v790 = vadd.f32 %v779, %v736
        %v791 = vadd.f32 %v780, %v741
        %v792 = vadd.f32 %v781, %v744
        %v793 = vadd.f32 %v782, %v749
        %v794 = vadd.f32 %v783, %v752
        %v795 = vadd.f32 %v784, %v757
        %v796 = vadd.f32 %v785, %v760
        %v797 = vadd.f32 %v786, %v765
        %v798 = vadd.f32 %v787, %v768
        %v799 = vadd.f32 %v788, %v773
        %800 = vst.msk [vmem:[#allocation2] sm:$0xff] %vm383, %v789
        %801 = vst.msk [vmem:[#allocation2 + $0x8] sm:$0xff] %vm383, %v790
        %802 = vst.msk [vmem:[#allocation2 + $0x10] sm:$0xff] %vm383, %v791
        %803 = vst.msk [vmem:[#allocation2 + $0x18] sm:$0xff] %vm383, %v792
        %804 = vst.msk [vmem:[#allocation2 + $0x20] sm:$0xff] %vm383, %v793
        %805 = vst.msk [vmem:[#allocation2 + $0x28] sm:$0xff] %vm383, %v794
        %806 = vst.msk [vmem:[#allocation2 + $0x30] sm:$0xff] %vm383, %v795
        %807 = vst.msk [vmem:[#allocation2 + $0x38] sm:$0xff] %vm383, %v796
        %808 = vst.msk [vmem:[#allocation2 + $0x40] sm:$0xff] %vm383, %v797
        %809 = vst.msk [vmem:[#allocation2 + $0x48] sm:$0xff] %vm383, %v798
        %810 = vst.msk [vmem:[#allocation2 + $0x50] sm:$0xff] %vm383, %v799
        %v811 = vld [vmem:[%s205 + $0x8] sm:$0x8]
        %v812 = vld [vmem:[%s205 + $0xc] sm:$0xf]
        %v813 = vld [vmem:[%s205 + $0x10] sm:$0xf]
        %v814 = vld [vmem:[%s205 + $0x14] sm:$0xf]
        %v815 = vld [vmem:[%s205 + $0x18] sm:$0xf]
        %v816 = vld [vmem:[%s205 + $0x1c] sm:$0xf]
        %v817 = vld [vmem:[%s205 + $0x20] sm:$0xf]
        %v818 = vld [vmem:[%s205 + $0x24] sm:$0xf]
        %v819 = vld [vmem:[%s205 + $0x28] sm:$0xf]
        %v820 = vld [vmem:[%s205 + $0x2c] sm:$0xf]
        %v821 = vld [vmem:[%s205 + $0x30] sm:$0xf]
        %v822 = vld [vmem:[%s205 + $0x34] sm:$0x7]
        %s823 = scalar_lea.vmem [#allocation6], 12
        %v824 = vld [vmem:[%s823] sm:$0xf]
        %v837 = vunpack.c.l.b16 %v811
        %v838 = vunpack.c.l.b16 %v812
        %v839 = vunpack.c.l.b16 %v813
        %v840 = vunpack.c.l.b16 %v814
        %v841 = vunpack.c.l.b16 %v815
        %v842 = vunpack.c.l.b16 %v816
        %v843 = vunpack.c.l.b16 %v817
        %v844 = vunpack.c.l.b16 %v818
        %v845 = vunpack.c.l.b16 %v819
        %v846 = vunpack.c.l.b16 %v820
        %v847 = vunpack.c.l.b16 %v821
        %v848 = vunpack.c.l.b16 %v822
        %v849 = vpack.c.b16 %v838, %v837
        %v850 = vpack.c.b16 %v840, %v839
        %v851 = vpack.c.b16 %v842, %v841
        %v852 = vpack.c.b16 %v844, %v843
        %v853 = vpack.c.b16 %v846, %v845
        %v854 = vpack.c.b16 %v848, %v847
        %vm855 = vcmask 1044480
        %v856 = vrot.slane %v849, 3
        %v857 = vrot.slane %v850, 3
        %v858 = vsel %vm855, %v856, %v857
        %v859 = vrot.slane %v851, 3
        %v860 = vsel %vm855, %v857, %v859
        %v861 = vrot.slane %v852, 3
        %v862 = vsel %vm855, %v859, %v861
        %v863 = vrot.slane %v853, 3
        %v864 = vsel %vm855, %v861, %v863
        %v865 = vrot.slane %v854, 3
        %v866 = vsel %vm855, %v863, %v865
        %v868 = vsel %vm280, %v858, 0
        %v871 = vsel %vm280, %v860, 0
        %v874 = vsel %vm280, %v862, 0
        %v877 = vsel %vm280, %v864, 0
        %v880 = vsel %vm280, %v866, 0
        %v883 = vsel %vm280, %v865, 0
        %v886 = vsel %vm299, %v824, 0
        %888 = vmatprep.subr.bf16.mxu0 0
        %889 = vmatpush1.bf16.msra.mxu0 %v886
        %890 = vmatprep.subr.bf16.mxu0 0
        %891 = vmatpush1.bf16.msra.mxu0 0
        %892 = vmatprep.subr.bf16.mxu0 0
        %893 = vmatpush1.bf16.msra.mxu0 0
        %894 = vmatprep.subr.bf16.mxu0 0
        %895 = vmatpush1.bf16.msra.mxu0 0
        %896 = vmatprep.subr.bf16.mxu0 0
        %897 = vmatpush1.bf16.msra.mxu0 0
        %898 = vmatprep.subr.bf16.mxu0 0
        %899 = vmatpush1.bf16.msra.mxu0 0
        %900 = vmatprep.subr.bf16.mxu0 0
        %901 = vmatpush1.bf16.msra.mxu0 0
        %902 = vmatprep.subr.bf16.mxu0 0
        %903 = vmatpush1.bf16.msra.mxu0 0
        %904 = vmatprep.subr.bf16.mxu0 0
        %905 = vmatpush1.bf16.msra.mxu0 0
        %906 = vmatprep.subr.bf16.mxu0 0
        %907 = vmatpush1.bf16.msra.mxu0 0
        %908 = vmatprep.subr.bf16.mxu0 0
        %909 = vmatpush1.bf16.msra.mxu0 0
        %910 = vmatprep.subr.bf16.mxu0 0
        %911 = vmatpush1.bf16.msra.mxu0 0
        %912 = vmatprep.subr.bf16.mxu0 0
        %913 = vmatpush1.bf16.msra.mxu0 0
        %914 = vmatprep.subr.bf16.mxu0 0
        %915 = vmatpush1.bf16.msra.mxu0 0
        %916 = vmatprep.subr.bf16.mxu0 0
        %917 = vmatpush1.bf16.msra.mxu0 0
        %918 = vmatprep.subr.bf16.mxu0 0
        %919 = vmatpush1.bf16.msra.mxu0 0
        %920 = vmatprep.mubr.bf16.mxu0 0
        %921 = vmatmul.mubr.bf16.gmra.mrb[0].mxu0 %v868
        %v922 = vpop.f32.mrb[0].mxu0
        %v923 = vadd.f32 0.0, %v922
        %v924 = vpop.f32.mrb[0].mxu0
        %v925 = vpop.f32.mrb[0].mxu0
        %v926 = vadd.f32 0.0, %v925
        %v927 = vpop.f32.mrb[0].mxu0
        %928 = vmatprep.mubr.bf16.mxu0 0
        %929 = vmatmul.mubr.bf16.gmra.mrb[0].mxu0 %v871
        %v930 = vpop.f32.mrb[0].mxu0
        %v931 = vadd.f32 0.0, %v930
        %v932 = vpop.f32.mrb[0].mxu0
        %v933 = vpop.f32.mrb[0].mxu0
        %v934 = vadd.f32 0.0, %v933
        %v935 = vpop.f32.mrb[0].mxu0
        %936 = vmatprep.mubr.bf16.mxu0 0
        %937 = vmatmul.mubr.bf16.gmra.mrb[0].mxu0 %v874
        %v938 = vpop.f32.mrb[0].mxu0
        %v939 = vadd.f32 0.0, %v938
        %v940 = vpop.f32.mrb[0].mxu0
        %v941 = vpop.f32.mrb[0].mxu0
        %v942 = vadd.f32 0.0, %v941
        %v943 = vpop.f32.mrb[0].mxu0
        %944 = vmatprep.mubr.bf16.mxu0 0
        %945 = vmatmul.mubr.bf16.gmra.mrb[0].mxu0 %v877
        %v946 = vpop.f32.mrb[0].mxu0
        %v947 = vadd.f32 0.0, %v946
        %v948 = vpop.f32.mrb[0].mxu0
        %v949 = vpop.f32.mrb[0].mxu0
        %v950 = vadd.f32 0.0, %v949
        %v951 = vpop.f32.mrb[0].mxu0
        %952 = vmatprep.mubr.bf16.mxu0 0
        %953 = vmatmul.mubr.bf16.gmra.mrb[0].mxu0 %v880
        %v954 = vpop.f32.mrb[0].mxu0
        %v955 = vadd.f32 0.0, %v954
        %v956 = vpop.f32.mrb[0].mxu0
        %v957 = vpop.f32.mrb[0].mxu0
        %v958 = vadd.f32 0.0, %v957
        %v959 = vpop.f32.mrb[0].mxu0
        %960 = vmatprep.mubr.bf16.mxu0 0
        %961 = vmatmul.mubr.bf16.gmra.mrb[0].mxu0 %v883
        %v962 = vpop.f32.mrb[0].mxu0
        %v963 = vadd.f32 0.0, %v962
        %v964 = vpop.f32.mrb[0].mxu0
        %v965 = vpop.f32.mrb[0].mxu0
        %v966 = vpop.f32.mrb[0].mxu0
        %967 = vdwg.mxu0
        %v968 = vld [vmem:[#allocation2] sm:$0xff]
        %v969 = vld [vmem:[#allocation2 + $0x8] sm:$0xff]
        %v970 = vld [vmem:[#allocation2 + $0x10] sm:$0xff]
        %v971 = vld [vmem:[#allocation2 + $0x18] sm:$0xff]
        %v972 = vld [vmem:[#allocation2 + $0x20] sm:$0xff]
        %v973 = vld [vmem:[#allocation2 + $0x28] sm:$0xff]
        %v974 = vld [vmem:[#allocation2 + $0x30] sm:$0xff]
        %v975 = vld [vmem:[#allocation2 + $0x38] sm:$0xff]
        %v976 = vld [vmem:[#allocation2 + $0x40] sm:$0xff]
        %v977 = vld [vmem:[#allocation2 + $0x48] sm:$0xff]
        %v978 = vld [vmem:[#allocation2 + $0x50] sm:$0xff]
        %v979 = vadd.f32 %v968, %v923
        %v980 = vadd.f32 %v969, %v926
        %v981 = vadd.f32 %v970, %v931
        %v982 = vadd.f32 %v971, %v934
        %v983 = vadd.f32 %v972, %v939
        %v984 = vadd.f32 %v973, %v942
        %v985 = vadd.f32 %v974, %v947
        %v986 = vadd.f32 %v975, %v950
        %v987 = vadd.f32 %v976, %v955
        %v988 = vadd.f32 %v977, %v958
        %v989 = vadd.f32 %v978, %v963
        %990 = vst.msk [vmem:[#allocation2] sm:$0xff] %vm383, %v979
        %991 = vst.msk [vmem:[#allocation2 + $0x8] sm:$0xff] %vm383, %v980
        %992 = vst.msk [vmem:[#allocation2 + $0x10] sm:$0xff] %vm383, %v981
        %993 = vst.msk [vmem:[#allocation2 + $0x18] sm:$0xff] %vm383, %v982
        %994 = vst.msk [vmem:[#allocation2 + $0x20] sm:$0xff] %vm383, %v983
        %995 = vst.msk [vmem:[#allocation2 + $0x28] sm:$0xff] %vm383, %v984
        %996 = vst.msk [vmem:[#allocation2 + $0x30] sm:$0xff] %vm383, %v985
        %997 = vst.msk [vmem:[#allocation2 + $0x38] sm:$0xff] %vm383, %v986
        %998 = vst.msk [vmem:[#allocation2 + $0x40] sm:$0xff] %vm383, %v987
        %999 = vst.msk [vmem:[#allocation2 + $0x48] sm:$0xff] %vm383, %v988
        %1000 = vst.msk [vmem:[#allocation2 + $0x50] sm:$0xff] %vm383, %v989
        %v1001 = vld [vmem:[%s205 + $0x8] sm:$0x8]
        %v1002 = vld [vmem:[%s205 + $0xc] sm:$0xf]
        %v1003 = vld [vmem:[%s205 + $0x10] sm:$0xf]
        %v1004 = vld [vmem:[%s205 + $0x14] sm:$0xf]
        %v1005 = vld [vmem:[%s205 + $0x18] sm:$0xf]
        %v1006 = vld [vmem:[%s205 + $0x1c] sm:$0xf]
        %v1007 = vld [vmem:[%s205 + $0x20] sm:$0xf]
        %v1008 = vld [vmem:[%s205 + $0x24] sm:$0xf]
        %v1009 = vld [vmem:[%s205 + $0x28] sm:$0xf]
        %v1010 = vld [vmem:[%s205 + $0x2c] sm:$0xf]
        %v1011 = vld [vmem:[%s205 + $0x30] sm:$0xf]
        %v1012 = vld [vmem:[%s205 + $0x34] sm:$0xf]
        %s1013 = scalar_lea.vmem [#allocation6], 16
        %v1014 = vld [vmem:[%s1013] sm:$0xf]
        %v1027 = vunpack.c.l.b16 %v1001
        %v1028 = vunpack.c.l.b16 %v1002
        %v1029 = vunpack.c.l.b16 %v1003
        %v1030 = vunpack.c.l.b16 %v1004
        %v1031 = vunpack.c.l.b16 %v1005
        %v1032 = vunpack.c.l.b16 %v1006
        %v1033 = vunpack.c.l.b16 %v1007
        %v1034 = vunpack.c.l.b16 %v1008
        %v1035 = vunpack.c.l.b16 %v1009
        %v1036 = vunpack.c.l.b16 %v1010
        %v1037 = vunpack.c.l.b16 %v1011
        %v1038 = vunpack.c.l.b16 %v1012
        %v1039 = vpack.c.b16 %v1028, %v1027
        %v1040 = vpack.c.b16 %v1030, %v1029
        %v1041 = vpack.c.b16 %v1032, %v1031
        %v1042 = vpack.c.b16 %v1034, %v1033
        %v1043 = vpack.c.b16 %v1036, %v1035
        %v1044 = vpack.c.b16 %v1038, %v1037
        %vm1045 = vsmask.f32 4352
        %v1047 = vshrl.u32 %v1039, 16
        %v1049 = vrot.slane %v1047, 3
        %v1050 = vshll.u32 %v1039, 16
        %v1052 = vrot.slane %v1050, 4
        %v1053 = vor.u32 %v1049, %v1052
        %v1055 = vshrl.u32 %v1040, 16
        %v1057 = vrot.slane %v1055, 3
        %v1058 = vshll.u32 %v1040, 16
        %v1060 = vrot.slane %v1058, 4
        %v1061 = vor.u32 %v1057, %v1060
        %v1062 = vsel %vm1045, %v1053, %v1061
        %v1064 = vshrl.u32 %v1041, 16
        %v1066 = vrot.slane %v1064, 3
        %v1067 = vshll.u32 %v1041, 16
        %v1069 = vrot.slane %v1067, 4
        %v1070 = vor.u32 %v1066, %v1069
        %v1071 = vsel %vm1045, %v1061, %v1070
        %v1073 = vshrl.u32 %v1042, 16
        %v1075 = vrot.slane %v1073, 3
        %v1076 = vshll.u32 %v1042, 16
        %v1078 = vrot.slane %v1076, 4
        %v1079 = vor.u32 %v1075, %v1078
        %v1080 = vsel %vm1045, %v1070, %v1079
        %v1082 = vshrl.u32 %v1043, 16
        %v1084 = vrot.slane %v1082, 3
        %v1085 = vshll.u32 %v1043, 16
        %v1087 = vrot.slane %v1085, 4
        %v1088 = vor.u32 %v1084, %v1087
        %v1089 = vsel %vm1045, %v1079, %v1088
        %v1091 = vshrl.u32 %v1044, 16
        %v1093 = vrot.slane %v1091, 3
        %v1094 = vshll.u32 %v1044, 16
        %v1096 = vrot.slane %v1094, 4
        %v1097 = vor.u32 %v1093, %v1096
        %v1098 = vsel %vm1045, %v1088, %v1097
        %v1100 = vsel %vm280, %v1062, 0
        %v1103 = vsel %vm280, %v1071, 0
        %v1106 = vsel %vm280, %v1080, 0
        %v1109 = vsel %vm280, %v1089, 0
        %v1112 = vsel %vm280, %v1098, 0
        %v1115 = vsel %vm280, %v1097, 0
        %v1118 = vsel %vm299, %v1014, 0
        %1120 = vmatprep.subr.bf16.mxu0 0
        %1121 = vmatpush1.bf16.msra.mxu0 %v1118
        %1122 = vmatprep.subr.bf16.mxu0 0
        %1123 = vmatpush1.bf16.msra.mxu0 0
        %1124 = vmatprep.subr.bf16.mxu0 0
        %1125 = vmatpush1.bf16.msra.mxu0 0
        %1126 = vmatprep.subr.bf16.mxu0 0
        %1127 = vmatpush1.bf16.msra.mxu0 0
        %1128 = vmatprep.subr.bf16.mxu0 0
        %1129 = vmatpush1.bf16.msra.mxu0 0
        %1130 = vmatprep.subr.bf16.mxu0 0
        %1131 = vmatpush1.bf16.msra.mxu0 0
        %1132 = vmatprep.subr.bf16.mxu0 0
        %1133 = vmatpush1.bf16.msra.mxu0 0
        %1134 = vmatprep.subr.bf16.mxu0 0
        %1135 = vmatpush1.bf16.msra.mxu0 0
        %1136 = vmatprep.subr.bf16.mxu0 0
        %1137 = vmatpush1.bf16.msra.mxu0 0
        %1138 = vmatprep.subr.bf16.mxu0 0
        %1139 = vmatpush1.bf16.msra.mxu0 0
        %1140 = vmatprep.subr.bf16.mxu0 0
        %1141 = vmatpush1.bf16.msra.mxu0 0
        %1142 = vmatprep.subr.bf16.mxu0 0
        %1143 = vmatpush1.bf16.msra.mxu0 0
        %1144 = vmatprep.subr.bf16.mxu0 0
        %1145 = vmatpush1.bf16.msra.mxu0 0
        %1146 = vmatprep.subr.bf16.mxu0 0
        %1147 = vmatpush1.bf16.msra.mxu0 0
        %1148 = vmatprep.subr.bf16.mxu0 0
        %1149 = vmatpush1.bf16.msra.mxu0 0
        %1150 = vmatprep.subr.bf16.mxu0 0
        %1151 = vmatpush1.bf16.msra.mxu0 0
        %1152 = vmatprep.mubr.bf16.mxu0 0
        %1153 = vmatmul.mubr.bf16.gmra.mrb[0].mxu0 %v1100
        %v1154 = vpop.f32.mrb[0].mxu0
        %v1155 = vadd.f32 0.0, %v1154
        %v1156 = vpop.f32.mrb[0].mxu0
        %v1157 = vpop.f32.mrb[0].mxu0
        %v1158 = vadd.f32 0.0, %v1157
        %v1159 = vpop.f32.mrb[0].mxu0
        %1160 = vmatprep.mubr.bf16.mxu0 0
        %1161 = vmatmul.mubr.bf16.gmra.mrb[0].mxu0 %v1103
        %v1162 = vpop.f32.mrb[0].mxu0
        %v1163 = vadd.f32 0.0, %v1162
        %v1164 = vpop.f32.mrb[0].mxu0
        %v1165 = vpop.f32.mrb[0].mxu0
        %v1166 = vadd.f32 0.0, %v1165
        %v1167 = vpop.f32.mrb[0].mxu0
        %1168 = vmatprep.mubr.bf16.mxu0 0
        %1169 = vmatmul.mubr.bf16.gmra.mrb[0].mxu0 %v1106
        %v1170 = vpop.f32.mrb[0].mxu0
        %v1171 = vadd.f32 0.0, %v1170
        %v1172 = vpop.f32.mrb[0].mxu0
        %v1173 = vpop.f32.mrb[0].mxu0
        %v1174 = vadd.f32 0.0, %v1173
        %v1175 = vpop.f32.mrb[0].mxu0
        %1176 = vmatprep.mubr.bf16.mxu0 0
        %1177 = vmatmul.mubr.bf16.gmra.mrb[0].mxu0 %v1109
        %v1178 = vpop.f32.mrb[0].mxu0
        %v1179 = vadd.f32 0.0, %v1178
        %v1180 = vpop.f32.mrb[0].mxu0
        %v1181 = vpop.f32.mrb[0].mxu0
        %v1182 = vadd.f32 0.0, %v1181
        %v1183 = vpop.f32.mrb[0].mxu0
        %1184 = vmatprep.mubr.bf16.mxu0 0
        %1185 = vmatmul.mubr.bf16.gmra.mrb[0].mxu0 %v1112
        %v1186 = vpop.f32.mrb[0].mxu0
        %v1187 = vadd.f32 0.0, %v1186
        %v1188 = vpop.f32.mrb[0].mxu0
        %v1189 = vpop.f32.mrb[0].mxu0
        %v1190 = vadd.f32 0.0, %v1189
        %v1191 = vpop.f32.mrb[0].mxu0
        %1192 = vmatprep.mubr.bf16.mxu0 0
        %1193 = vmatmul.mubr.bf16.gmra.mrb[0].mxu0 %v1115
        %v1194 = vpop.f32.mrb[0].mxu0
        %v1195 = vadd.f32 0.0, %v1194
        %v1196 = vpop.f32.mrb[0].mxu0
        %v1197 = vpop.f32.mrb[0].mxu0
        %v1198 = vpop.f32.mrb[0].mxu0
        %1199 = vdwg.mxu0
        %v1200 = vld [vmem:[#allocation2] sm:$0xff]
        %v1201 = vld [vmem:[#allocation2 + $0x8] sm:$0xff]
        %v1202 = vld [vmem:[#allocation2 + $0x10] sm:$0xff]
        %v1203 = vld [vmem:[#allocation2 + $0x18] sm:$0xff]
        %v1204 = vld [vmem:[#allocation2 + $0x20] sm:$0xff]
        %v1205 = vld [vmem:[#allocation2 + $0x28] sm:$0xff]
        %v1206 = vld [vmem:[#allocation2 + $0x30] sm:$0xff]
        %v1207 = vld [vmem:[#allocation2 + $0x38] sm:$0xff]
        %v1208 = vld [vmem:[#allocation2 + $0x40] sm:$0xff]
        %v1209 = vld [vmem:[#allocation2 + $0x48] sm:$0xff]
        %v1210 = vld [vmem:[#allocation2 + $0x50] sm:$0xff]
        %v1211 = vadd.f32 %v1200, %v1155
        %v1212 = vadd.f32 %v1201, %v1158
        %v1213 = vadd.f32 %v1202, %v1163
        %v1214 = vadd.f32 %v1203, %v1166
        %v1215 = vadd.f32 %v1204, %v1171
        %v1216 = vadd.f32 %v1205, %v1174
        %v1217 = vadd.f32 %v1206, %v1179
        %v1218 = vadd.f32 %v1207, %v1182
        %v1219 = vadd.f32 %v1208, %v1187
        %v1220 = vadd.f32 %v1209, %v1190
        %v1221 = vadd.f32 %v1210, %v1195
        %1222 = vst.msk [vmem:[#allocation2] sm:$0xff] %vm383, %v1211
        %1223 = vst.msk [vmem:[#allocation2 + $0x8] sm:$0xff] %vm383, %v1212
        %1224 = vst.msk [vmem:[#allocation2 + $0x10] sm:$0xff] %vm383, %v1213
        %1225 = vst.msk [vmem:[#allocation2 + $0x18] sm:$0xff] %vm383, %v1214
        %1226 = vst.msk [vmem:[#allocation2 + $0x20] sm:$0xff] %vm383, %v1215
        %1227 = vst.msk [vmem:[#allocation2 + $0x28] sm:$0xff] %vm383, %v1216
        %1228 = vst.msk [vmem:[#allocation2 + $0x30] sm:$0xff] %vm383, %v1217
        %1229 = vst.msk [vmem:[#allocation2 + $0x38] sm:$0xff] %vm383, %v1218
        %1230 = vst.msk [vmem:[#allocation2 + $0x40] sm:$0xff] %vm383, %v1219
        %1231 = vst.msk [vmem:[#allocation2 + $0x48] sm:$0xff] %vm383, %v1220
        %1232 = vst.msk [vmem:[#allocation2 + $0x50] sm:$0xff] %vm383, %v1221
        %v1233 = vld [vmem:[%s205 + $0xc] sm:$0xf]
        %v1234 = vld [vmem:[%s205 + $0x10] sm:$0xf]
        %v1235 = vld [vmem:[%s205 + $0x14] sm:$0xf]
        %v1236 = vld [vmem:[%s205 + $0x18] sm:$0xf]
        %v1237 = vld [vmem:[%s205 + $0x1c] sm:$0xf]
        %v1238 = vld [vmem:[%s205 + $0x20] sm:$0xf]
        %v1239 = vld [vmem:[%s205 + $0x24] sm:$0xf]
        %v1240 = vld [vmem:[%s205 + $0x28] sm:$0xf]
        %v1241 = vld [vmem:[%s205 + $0x2c] sm:$0xf]
        %v1242 = vld [vmem:[%s205 + $0x30] sm:$0xf]
        %v1243 = vld [vmem:[%s205 + $0x34] sm:$0xf]
        %s1244 = scalar_lea.vmem [#allocation6], 20
        %v1245 = vld [vmem:[%s1244] sm:$0xf]
        %v1257 = vunpack.c.l.b16 %v1233
        %v1258 = vunpack.c.l.b16 %v1234
        %v1259 = vunpack.c.l.b16 %v1235
        %v1260 = vunpack.c.l.b16 %v1236
        %v1261 = vunpack.c.l.b16 %v1237
        %v1262 = vunpack.c.l.b16 %v1238
        %v1263 = vunpack.c.l.b16 %v1239
        %v1264 = vunpack.c.l.b16 %v1240
        %v1265 = vunpack.c.l.b16 %v1241
        %v1266 = vunpack.c.l.b16 %v1242
        %v1267 = vunpack.c.l.b16 %v1243
        %v1268 = vpack.c.b16 %v1258, %v1257
        %v1269 = vpack.c.b16 %v1260, %v1259
        %v1270 = vpack.c.b16 %v1262, %v1261
        %v1271 = vpack.c.b16 %v1264, %v1263
        %v1272 = vpack.c.b16 %v1266, %v1265
        %v1273 = vpack.c.b16 %v1267, %v1267
        %v1275 = vsel %vm280, %v1268, 0
        %v1278 = vsel %vm280, %v1269, 0
        %v1281 = vsel %vm280, %v1270, 0
        %v1284 = vsel %vm280, %v1271, 0
        %v1287 = vsel %vm280, %v1272, 0
        %v1290 = vsel %vm280, %v1273, 0
        %v1293 = vsel %vm299, %v1245, 0
        %1295 = vmatprep.subr.bf16.mxu0 0
        %1296 = vmatpush1.bf16.msra.mxu0 %v1293
        %1297 = vmatprep.subr.bf16.mxu0 0
        %1298 = vmatpush1.bf16.msra.mxu0 0
        %1299 = vmatprep.subr.bf16.mxu0 0
        %1300 = vmatpush1.bf16.msra.mxu0 0
        %1301 = vmatprep.subr.bf16.mxu0 0
        %1302 = vmatpush1.bf16.msra.mxu0 0
        %1303 = vmatprep.subr.bf16.mxu0 0
        %1304 = vmatpush1.bf16.msra.mxu0 0
        %1305 = vmatprep.subr.bf16.mxu0 0
        %1306 = vmatpush1.bf16.msra.mxu0 0
        %1307 = vmatprep.subr.bf16.mxu0 0
        %1308 = vmatpush1.bf16.msra.mxu0 0
        %1309 = vmatprep.subr.bf16.mxu0 0
        %1310 = vmatpush1.bf16.msra.mxu0 0
        %1311 = vmatprep.subr.bf16.mxu0 0
        %1312 = vmatpush1.bf16.msra.mxu0 0
        %1313 = vmatprep.subr.bf16.mxu0 0
        %1314 = vmatpush1.bf16.msra.mxu0 0
        %1315 = vmatprep.subr.bf16.mxu0 0
        %1316 = vmatpush1.bf16.msra.mxu0 0
        %1317 = vmatprep.subr.bf16.mxu0 0
        %1318 = vmatpush1.bf16.msra.mxu0 0
        %1319 = vmatprep.subr.bf16.mxu0 0
        %1320 = vmatpush1.bf16.msra.mxu0 0
        %1321 = vmatprep.subr.bf16.mxu0 0
        %1322 = vmatpush1.bf16.msra.mxu0 0
        %1323 = vmatprep.subr.bf16.mxu0 0
        %1324 = vmatpush1.bf16.msra.mxu0 0
        %1325 = vmatprep.subr.bf16.mxu0 0
        %1326 = vmatpush1.bf16.msra.mxu0 0
        %1327 = vmatprep.mubr.bf16.mxu0 0
        %1328 = vmatmul.mubr.bf16.gmra.mrb[0].mxu0 %v1275
        %v1329 = vpop.f32.mrb[0].mxu0
        %v1330 = vadd.f32 0.0, %v1329
        %v1331 = vpop.f32.mrb[0].mxu0
        %v1332 = vpop.f32.mrb[0].mxu0
        %v1333 = vadd.f32 0.0, %v1332
        %v1334 = vpop.f32.mrb[0].mxu0
        %1335 = vmatprep.mubr.bf16.mxu0 0
        %1336 = vmatmul.mubr.bf16.gmra.mrb[0].mxu0 %v1278
        %v1337 = vpop.f32.mrb[0].mxu0
        %v1338 = vadd.f32 0.0, %v1337
        %v1339 = vpop.f32.mrb[0].mxu0
        %v1340 = vpop.f32.mrb[0].mxu0
        %v1341 = vadd.f32 0.0, %v1340
        %v1342 = vpop.f32.mrb[0].mxu0
        %1343 = vmatprep.mubr.bf16.mxu0 0
        %1344 = vmatmul.mubr.bf16.gmra.mrb[0].mxu0 %v1281
        %v1345 = vpop.f32.mrb[0].mxu0
        %v1346 = vadd.f32 0.0, %v1345
        %v1347 = vpop.f32.mrb[0].mxu0
        %v1348 = vpop.f32.mrb[0].mxu0
        %v1349 = vadd.f32 0.0, %v1348
        %v1350 = vpop.f32.mrb[0].mxu0
        %1351 = vmatprep.mubr.bf16.mxu0 0
        %1352 = vmatmul.mubr.bf16.gmra.mrb[0].mxu0 %v1284
        %v1353 = vpop.f32.mrb[0].mxu0
        %v1354 = vadd.f32 0.0, %v1353
        %v1355 = vpop.f32.mrb[0].mxu0
        %v1356 = vpop.f32.mrb[0].mxu0
        %v1357 = vadd.f32 0.0, %v1356
        %v1358 = vpop.f32.mrb[0].mxu0
        %1359 = vmatprep.mubr.bf16.mxu0 0
        %1360 = vmatmul.mubr.bf16.gmra.mrb[0].mxu0 %v1287
        %v1361 = vpop.f32.mrb[0].mxu0
        %v1362 = vadd.f32 0.0, %v1361
        %v1363 = vpop.f32.mrb[0].mxu0
        %v1364 = vpop.f32.mrb[0].mxu0
        %v1365 = vadd.f32 0.0, %v1364
        %v1366 = vpop.f32.mrb[0].mxu0
        %1367 = vmatprep.mubr.bf16.mxu0 0
        %1368 = vmatmul.mubr.bf16.gmra.mrb[0].mxu0 %v1290
        %v1369 = vpop.f32.mrb[0].mxu0
        %v1370 = vadd.f32 0.0, %v1369
        %v1371 = vpop.f32.mrb[0].mxu0
        %v1372 = vpop.f32.mrb[0].mxu0
        %v1373 = vpop.f32.mrb[0].mxu0
        %1374 = vdwg.mxu0
        %v1375 = vld [vmem:[#allocation2] sm:$0xff]
        %v1376 = vld [vmem:[#allocation2 + $0x8] sm:$0xff]
        %v1377 = vld [vmem:[#allocation2 + $0x10] sm:$0xff]
        %v1378 = vld [vmem:[#allocation2 + $0x18] sm:$0xff]
        %v1379 = vld [vmem:[#allocation2 + $0x20] sm:$0xff]
        %v1380 = vld [vmem:[#allocation2 + $0x28] sm:$0xff]
        %v1381 = vld [vmem:[#allocation2 + $0x30] sm:$0xff]
        %v1382 = vld [vmem:[#allocation2 + $0x38] sm:$0xff]
        %v1383 = vld [vmem:[#allocation2 + $0x40] sm:$0xff]
        %v1384 = vld [vmem:[#allocation2 + $0x48] sm:$0xff]
        %v1385 = vld [vmem:[#allocation2 + $0x50] sm:$0xff]
        %v1386 = vadd.f32 %v1375, %v1330
        %v1387 = vadd.f32 %v1376, %v1333
        %v1388 = vadd.f32 %v1377, %v1338
        %v1389 = vadd.f32 %v1378, %v1341
        %v1390 = vadd.f32 %v1379, %v1346
        %v1391 = vadd.f32 %v1380, %v1349
        %v1392 = vadd.f32 %v1381, %v1354
        %v1393 = vadd.f32 %v1382, %v1357
        %v1394 = vadd.f32 %v1383, %v1362
        %v1395 = vadd.f32 %v1384, %v1365
        %v1396 = vadd.f32 %v1385, %v1370
        %1397 = vst.msk [vmem:[#allocation2] sm:$0xff] %vm383, %v1386
        %1398 = vst.msk [vmem:[#allocation2 + $0x8] sm:$0xff] %vm383, %v1387
        %1399 = vst.msk [vmem:[#allocation2 + $0x10] sm:$0xff] %vm383, %v1388
        %1400 = vst.msk [vmem:[#allocation2 + $0x18] sm:$0xff] %vm383, %v1389
        %1401 = vst.msk [vmem:[#allocation2 + $0x20] sm:$0xff] %vm383, %v1390
        %1402 = vst.msk [vmem:[#allocation2 + $0x28] sm:$0xff] %vm383, %v1391
        %1403 = vst.msk [vmem:[#allocation2 + $0x30] sm:$0xff] %vm383, %v1392
        %1404 = vst.msk [vmem:[#allocation2 + $0x38] sm:$0xff] %vm383, %v1393
        %1405 = vst.msk [vmem:[#allocation2 + $0x40] sm:$0xff] %vm383, %v1394
        %1406 = vst.msk [vmem:[#allocation2 + $0x48] sm:$0xff] %vm383, %v1395
        %1407 = vst.msk [vmem:[#allocation2 + $0x50] sm:$0xff] %vm383, %v1396
        %v1408 = vld [vmem:[%s205 + $0x14] sm:$0xc]
        %v1409 = vld [vmem:[%s205 + $0x18] sm:$0xf]
        %v1410 = vld [vmem:[%s205 + $0x1c] sm:$0xf]
        %v1411 = vld [vmem:[%s205 + $0x20] sm:$0xf]
        %v1412 = vld [vmem:[%s205 + $0x24] sm:$0xf]
        %v1413 = vld [vmem:[%s205 + $0x28] sm:$0xf]
        %v1414 = vld [vmem:[%s205 + $0x2c] sm:$0xf]
        %v1415 = vld [vmem:[%s205 + $0x30] sm:$0xf]
        %v1416 = vld [vmem:[%s205 + $0x34] sm:$0xf]
        %v1417 = vld [vmem:[%s205 + $0x38] sm:$0xf]
        %v1418 = vld [vmem:[%s205 + $0x3c] sm:$0xf]
        %v1419 = vld [vmem:[%s205 + $0x40] sm:$0x3]
        %s1420 = scalar_lea.vmem [#allocation6], 24
        %v1421 = vld [vmem:[%s1420] sm:$0xf]
        %v1434 = vunpack.c.l.b16 %v1408
        %v1435 = vunpack.c.l.b16 %v1409
        %v1436 = vunpack.c.l.b16 %v1410
        %v1437 = vunpack.c.l.b16 %v1411
        %v1438 = vunpack.c.l.b16 %v1412
        %v1439 = vunpack.c.l.b16 %v1413
        %v1440 = vunpack.c.l.b16 %v1414
        %v1441 = vunpack.c.l.b16 %v1415
        %v1442 = vunpack.c.l.b16 %v1416
        %v1443 = vunpack.c.l.b16 %v1417
        %v1444 = vunpack.c.l.b16 %v1418
        %v1445 = vunpack.c.l.b16 %v1419
        %v1446 = vpack.c.b16 %v1435, %v1434
        %v1447 = vpack.c.b16 %v1437, %v1436
        %v1448 = vpack.c.b16 %v1439, %v1438
        %v1449 = vpack.c.b16 %v1441, %v1440
        %v1450 = vpack.c.b16 %v1443, %v1442
        %v1451 = vpack.c.b16 %v1445, %v1444
        %vm1452 = vcmask 1045504
        %v1453 = vrot.slane %v1446, 2
        %v1454 = vrot.slane %v1447, 2
        %v1455 = vsel %vm1452, %v1453, %v1454
        %v1456 = vrot.slane %v1448, 2
        %v1457 = vsel %vm1452, %v1454, %v1456
        %v1458 = vrot.slane %v1449, 2
        %v1459 = vsel %vm1452, %v1456, %v1458
        %v1460 = vrot.slane %v1450, 2
        %v1461 = vsel %vm1452, %v1458, %v1460
        %v1462 = vrot.slane %v1451, 2
        %v1463 = vsel %vm1452, %v1460, %v1462
        %v1465 = vsel %vm280, %v1455, 0
        %v1468 = vsel %vm280, %v1457, 0
        %v1471 = vsel %vm280, %v1459, 0
        %v1474 = vsel %vm280, %v1461, 0
        %v1477 = vsel %vm280, %v1463, 0
        %v1480 = vsel %vm280, %v1462, 0
        %v1483 = vsel %vm299, %v1421, 0
        %1485 = vmatprep.subr.bf16.mxu0 0
        %1486 = vmatpush1.bf16.msra.mxu0 %v1483
        %1487 = vmatprep.subr.bf16.mxu0 0
        %1488 = vmatpush1.bf16.msra.mxu0 0
        %1489 = vmatprep.subr.bf16.mxu0 0
        %1490 = vmatpush1.bf16.msra.mxu0 0
        %1491 = vmatprep.subr.bf16.mxu0 0
        %1492 = vmatpush1.bf16.msra.mxu0 0
        %1493 = vmatprep.subr.bf16.mxu0 0
        %1494 = vmatpush1.bf16.msra.mxu0 0
        %1495 = vmatprep.subr.bf16.mxu0 0
        %1496 = vmatpush1.bf16.msra.mxu0 0
        %1497 = vmatprep.subr.bf16.mxu0 0
        %1498 = vmatpush1.bf16.msra.mxu0 0
        %1499 = vmatprep.subr.bf16.mxu0 0
        %1500 = vmatpush1.bf16.msra.mxu0 0
        %1501 = vmatprep.subr.bf16.mxu0 0
        %1502 = vmatpush1.bf16.msra.mxu0 0
        %1503 = vmatprep.subr.bf16.mxu0 0
        %1504 = vmatpush1.bf16.msra.mxu0 0
        %1505 = vmatprep.subr.bf16.mxu0 0
        %1506 = vmatpush1.bf16.msra.mxu0 0
        %1507 = vmatprep.subr.bf16.mxu0 0
        %1508 = vmatpush1.bf16.msra.mxu0 0
        %1509 = vmatprep.subr.bf16.mxu0 0
        %1510 = vmatpush1.bf16.msra.mxu0 0
        %1511 = vmatprep.subr.bf16.mxu0 0
        %1512 = vmatpush1.bf16.msra.mxu0 0
        %1513 = vmatprep.subr.bf16.mxu0 0
        %1514 = vmatpush1.bf16.msra.mxu0 0
        %1515 = vmatprep.subr.bf16.mxu0 0
        %1516 = vmatpush1.bf16.msra.mxu0 0
        %1517 = vmatprep.mubr.bf16.mxu0 0
        %1518 = vmatmul.mubr.bf16.gmra.mrb[0].mxu0 %v1465
        %v1519 = vpop.f32.mrb[0].mxu0
        %v1520 = vadd.f32 0.0, %v1519
        %v1521 = vpop.f32.mrb[0].mxu0
        %v1522 = vpop.f32.mrb[0].mxu0
        %v1523 = vadd.f32 0.0, %v1522
        %v1524 = vpop.f32.mrb[0].mxu0
        %1525 = vmatprep.mubr.bf16.mxu0 0
        %1526 = vmatmul.mubr.bf16.gmra.mrb[0].mxu0 %v1468
        %v1527 = vpop.f32.mrb[0].mxu0
        %v1528 = vadd.f32 0.0, %v1527
        %v1529 = vpop.f32.mrb[0].mxu0
        %v1530 = vpop.f32.mrb[0].mxu0
        %v1531 = vadd.f32 0.0, %v1530
        %v1532 = vpop.f32.mrb[0].mxu0
        %1533 = vmatprep.mubr.bf16.mxu0 0
        %1534 = vmatmul.mubr.bf16.gmra.mrb[0].mxu0 %v1471
        %v1535 = vpop.f32.mrb[0].mxu0
        %v1536 = vadd.f32 0.0, %v1535
        %v1537 = vpop.f32.mrb[0].mxu0
        %v1538 = vpop.f32.mrb[0].mxu0
        %v1539 = vadd.f32 0.0, %v1538
        %v1540 = vpop.f32.mrb[0].mxu0
        %1541 = vmatprep.mubr.bf16.mxu0 0
        %1542 = vmatmul.mubr.bf16.gmra.mrb[0].mxu0 %v1474
        %v1543 = vpop.f32.mrb[0].mxu0
        %v1544 = vadd.f32 0.0, %v1543
        %v1545 = vpop.f32.mrb[0].mxu0
        %v1546 = vpop.f32.mrb[0].mxu0
        %v1547 = vadd.f32 0.0, %v1546
        %v1548 = vpop.f32.mrb[0].mxu0
        %1549 = vmatprep.mubr.bf16.mxu0 0
        %1550 = vmatmul.mubr.bf16.gmra.mrb[0].mxu0 %v1477
        %v1551 = vpop.f32.mrb[0].mxu0
        %v1552 = vadd.f32 0.0, %v1551
        %v1553 = vpop.f32.mrb[0].mxu0
        %v1554 = vpop.f32.mrb[0].mxu0
        %v1555 = vadd.f32 0.0, %v1554
        %v1556 = vpop.f32.mrb[0].mxu0
        %1557 = vmatprep.mubr.bf16.mxu0 0
        %1558 = vmatmul.mubr.bf16.gmra.mrb[0].mxu0 %v1480
        %v1559 = vpop.f32.mrb[0].mxu0
        %v1560 = vadd.f32 0.0, %v1559
        %v1561 = vpop.f32.mrb[0].mxu0
        %v1562 = vpop.f32.mrb[0].mxu0
        %v1563 = vpop.f32.mrb[0].mxu0
        %1564 = vdwg.mxu0
        %v1565 = vld [vmem:[#allocation2] sm:$0xff]
        %v1566 = vld [vmem:[#allocation2 + $0x8] sm:$0xff]
        %v1567 = vld [vmem:[#allocation2 + $0x10] sm:$0xff]
        %v1568 = vld [vmem:[#allocation2 + $0x18] sm:$0xff]
        %v1569 = vld [vmem:[#allocation2 + $0x20] sm:$0xff]
        %v1570 = vld [vmem:[#allocation2 + $0x28] sm:$0xff]
        %v1571 = vld [vmem:[#allocation2 + $0x30] sm:$0xff]
        %v1572 = vld [vmem:[#allocation2 + $0x38] sm:$0xff]
        %v1573 = vld [vmem:[#allocation2 + $0x40] sm:$0xff]
        %v1574 = vld [vmem:[#allocation2 + $0x48] sm:$0xff]
        %v1575 = vld [vmem:[#allocation2 + $0x50] sm:$0xff]
        %v1576 = vadd.f32 %v1565, %v1520
        %v1577 = vadd.f32 %v1566, %v1523
        %v1578 = vadd.f32 %v1567, %v1528
        %v1579 = vadd.f32 %v1568, %v1531
        %v1580 = vadd.f32 %v1569, %v1536
        %v1581 = vadd.f32 %v1570, %v1539
        %v1582 = vadd.f32 %v1571, %v1544
        %v1583 = vadd.f32 %v1572, %v1547
        %v1584 = vadd.f32 %v1573, %v1552
        %v1585 = vadd.f32 %v1574, %v1555
        %v1586 = vadd.f32 %v1575, %v1560
        %1587 = vst.msk [vmem:[#allocation2] sm:$0xff] %vm383, %v1576
        %1588 = vst.msk [vmem:[#allocation2 + $0x8] sm:$0xff] %vm383, %v1577
        %1589 = vst.msk [vmem:[#allocation2 + $0x10] sm:$0xff] %vm383, %v1578
        %1590 = vst.msk [vmem:[#allocation2 + $0x18] sm:$0xff] %vm383, %v1579
        %1591 = vst.msk [vmem:[#allocation2 + $0x20] sm:$0xff] %vm383, %v1580
        %1592 = vst.msk [vmem:[#allocation2 + $0x28] sm:$0xff] %vm383, %v1581
        %1593 = vst.msk [vmem:[#allocation2 + $0x30] sm:$0xff] %vm383, %v1582
        %1594 = vst.msk [vmem:[#allocation2 + $0x38] sm:$0xff] %vm383, %v1583
        %1595 = vst.msk [vmem:[#allocation2 + $0x40] sm:$0xff] %vm383, %v1584
        %1596 = vst.msk [vmem:[#allocation2 + $0x48] sm:$0xff] %vm383, %v1585
        %1597 = vst.msk [vmem:[#allocation2 + $0x50] sm:$0xff] %vm383, %v1586
        %v1598 = vld [vmem:[%s205 + $0x14] sm:$0xc]
        %v1599 = vld [vmem:[%s205 + $0x18] sm:$0xf]
        %v1600 = vld [vmem:[%s205 + $0x1c] sm:$0xf]
        %v1601 = vld [vmem:[%s205 + $0x20] sm:$0xf]
        %v1602 = vld [vmem:[%s205 + $0x24] sm:$0xf]
        %v1603 = vld [vmem:[%s205 + $0x28] sm:$0xf]
        %v1604 = vld [vmem:[%s205 + $0x2c] sm:$0xf]
        %v1605 = vld [vmem:[%s205 + $0x30] sm:$0xf]
        %v1606 = vld [vmem:[%s205 + $0x34] sm:$0xf]
        %v1607 = vld [vmem:[%s205 + $0x38] sm:$0xf]
        %v1608 = vld [vmem:[%s205 + $0x3c] sm:$0xf]
        %v1609 = vld [vmem:[%s205 + $0x40] sm:$0x7]
        %s1610 = scalar_lea.vmem [#allocation6], 28
        %v1611 = vld [vmem:[%s1610] sm:$0xf]
        %v1624 = vunpack.c.l.b16 %v1598
        %v1625 = vunpack.c.l.b16 %v1599
        %v1626 = vunpack.c.l.b16 %v1600
        %v1627 = vunpack.c.l.b16 %v1601
        %v1628 = vunpack.c.l.b16 %v1602
        %v1629 = vunpack.c.l.b16 %v1603
        %v1630 = vunpack.c.l.b16 %v1604
        %v1631 = vunpack.c.l.b16 %v1605
        %v1632 = vunpack.c.l.b16 %v1606
        %v1633 = vunpack.c.l.b16 %v1607
        %v1634 = vunpack.c.l.b16 %v1608
        %v1635 = vunpack.c.l.b16 %v1609
        %v1636 = vpack.c.b16 %v1625, %v1624
        %v1637 = vpack.c.b16 %v1627, %v1626
        %v1638 = vpack.c.b16 %v1629, %v1628
        %v1639 = vpack.c.b16 %v1631, %v1630
        %v1640 = vpack.c.b16 %v1633, %v1632
        %v1641 = vpack.c.b16 %v1635, %v1634
        %vm1642 = vsmask.f32 5376
        %v1644 = vshrl.u32 %v1636, 16
        %v1646 = vrot.slane %v1644, 2
        %v1647 = vshll.u32 %v1636, 16
        %v1649 = vrot.slane %v1647, 3
        %v1650 = vor.u32 %v1646, %v1649
        %v1652 = vshrl.u32 %v1637, 16
        %v1654 = vrot.slane %v1652, 2
        %v1655 = vshll.u32 %v1637, 16
        %v1657 = vrot.slane %v1655, 3
        %v1658 = vor.u32 %v1654, %v1657
        %v1659 = vsel %vm1642, %v1650, %v1658
        %v1661 = vshrl.u32 %v1638, 16
        %v1663 = vrot.slane %v1661, 2
        %v1664 = vshll.u32 %v1638, 16
        %v1666 = vrot.slane %v1664, 3
        %v1667 = vor.u32 %v1663, %v1666
        %v1668 = vsel %vm1642, %v1658, %v1667
        %v1670 = vshrl.u32 %v1639, 16
        %v1672 = vrot.slane %v1670, 2
        %v1673 = vshll.u32 %v1639, 16
        %v1675 = vrot.slane %v1673, 3
        %v1676 = vor.u32 %v1672, %v1675
        %v1677 = vsel %vm1642, %v1667, %v1676
        %v1679 = vshrl.u32 %v1640, 16
        %v1681 = vrot.slane %v1679, 2
        %v1682 = vshll.u32 %v1640, 16
        %v1684 = vrot.slane %v1682, 3
        %v1685 = vor.u32 %v1681, %v1684
        %v1686 = vsel %vm1642, %v1676, %v1685
        %v1688 = vshrl.u32 %v1641, 16
        %v1690 = vrot.slane %v1688, 2
        %v1691 = vshll.u32 %v1641, 16
        %v1693 = vrot.slane %v1691, 3
        %v1694 = vor.u32 %v1690, %v1693
        %v1695 = vsel %vm1642, %v1685, %v1694
        %v1697 = vsel %vm280, %v1659, 0
        %v1700 = vsel %vm280, %v1668, 0
        %v1703 = vsel %vm280, %v1677, 0
        %v1706 = vsel %vm280, %v1686, 0
        %v1709 = vsel %vm280, %v1695, 0
        %v1712 = vsel %vm280, %v1694, 0
        %v1715 = vsel %vm299, %v1611, 0
        %1717 = vmatprep.subr.bf16.mxu0 0
        %1718 = vmatpush1.bf16.msra.mxu0 %v1715
        %1719 = vmatprep.subr.bf16.mxu0 0
        %1720 = vmatpush1.bf16.msra.mxu0 0
        %1721 = vmatprep.subr.bf16.mxu0 0
        %1722 = vmatpush1.bf16.msra.mxu0 0
        %1723 = vmatprep.subr.bf16.mxu0 0
        %1724 = vmatpush1.bf16.msra.mxu0 0
        %1725 = vmatprep.subr.bf16.mxu0 0
        %1726 = vmatpush1.bf16.msra.mxu0 0
        %1727 = vmatprep.subr.bf16.mxu0 0
        %1728 = vmatpush1.bf16.msra.mxu0 0
        %1729 = vmatprep.subr.bf16.mxu0 0
        %1730 = vmatpush1.bf16.msra.mxu0 0
        %1731 = vmatprep.subr.bf16.mxu0 0
        %1732 = vmatpush1.bf16.msra.mxu0 0
        %1733 = vmatprep.subr.bf16.mxu0 0
        %1734 = vmatpush1.bf16.msra.mxu0 0
        %1735 = vmatprep.subr.bf16.mxu0 0
        %1736 = vmatpush1.bf16.msra.mxu0 0
        %1737 = vmatprep.subr.bf16.mxu0 0
        %1738 = vmatpush1.bf16.msra.mxu0 0
        %1739 = vmatprep.subr.bf16.mxu0 0
        %1740 = vmatpush1.bf16.msra.mxu0 0
        %1741 = vmatprep.subr.bf16.mxu0 0
        %1742 = vmatpush1.bf16.msra.mxu0 0
        %1743 = vmatprep.subr.bf16.mxu0 0
        %1744 = vmatpush1.bf16.msra.mxu0 0
        %1745 = vmatprep.subr.bf16.mxu0 0
        %1746 = vmatpush1.bf16.msra.mxu0 0
        %1747 = vmatprep.subr.bf16.mxu0 0
        %1748 = vmatpush1.bf16.msra.mxu0 0
        %1749 = vmatprep.mubr.bf16.mxu0 0
        %1750 = vmatmul.mubr.bf16.gmra.mrb[0].mxu0 %v1697
        %v1751 = vpop.f32.mrb[0].mxu0
        %v1752 = vadd.f32 0.0, %v1751
        %v1753 = vpop.f32.mrb[0].mxu0
        %v1754 = vpop.f32.mrb[0].mxu0
        %v1755 = vadd.f32 0.0, %v1754
        %v1756 = vpop.f32.mrb[0].mxu0
        %1757 = vmatprep.mubr.bf16.mxu0 0
        %1758 = vmatmul.mubr.bf16.gmra.mrb[0].mxu0 %v1700
        %v1759 = vpop.f32.mrb[0].mxu0
        %v1760 = vadd.f32 0.0, %v1759
        %v1761 = vpop.f32.mrb[0].mxu0
        %v1762 = vpop.f32.mrb[0].mxu0
        %v1763 = vadd.f32 0.0, %v1762
        %v1764 = vpop.f32.mrb[0].mxu0
        %1765 = vmatprep.mubr.bf16.mxu0 0
        %1766 = vmatmul.mubr.bf16.gmra.mrb[0].mxu0 %v1703
        %v1767 = vpop.f32.mrb[0].mxu0
        %v1768 = vadd.f32 0.0, %v1767
        %v1769 = vpop.f32.mrb[0].mxu0
        %v1770 = vpop.f32.mrb[0].mxu0
        %v1771 = vadd.f32 0.0, %v1770
        %v1772 = vpop.f32.mrb[0].mxu0
        %1773 = vmatprep.mubr.bf16.mxu0 0
        %1774 = vmatmul.mubr.bf16.gmra.mrb[0].mxu0 %v1706
        %v1775 = vpop.f32.mrb[0].mxu0
        %v1776 = vadd.f32 0.0, %v1775
        %v1777 = vpop.f32.mrb[0].mxu0
        %v1778 = vpop.f32.mrb[0].mxu0
        %v1779 = vadd.f32 0.0, %v1778
        %v1780 = vpop.f32.mrb[0].mxu0
        %1781 = vmatprep.mubr.bf16.mxu0 0
        %1782 = vmatmul.mubr.bf16.gmra.mrb[0].mxu0 %v1709
        %v1783 = vpop.f32.mrb[0].mxu0
        %v1784 = vadd.f32 0.0, %v1783
        %v1785 = vpop.f32.mrb[0].mxu0
        %v1786 = vpop.f32.mrb[0].mxu0
        %v1787 = vadd.f32 0.0, %v1786
        %v1788 = vpop.f32.mrb[0].mxu0
        %1789 = vmatprep.mubr.bf16.mxu0 0
        %1790 = vmatmul.mubr.bf16.gmra.mrb[0].mxu0 %v1712
        %v1791 = vpop.f32.mrb[0].mxu0
        %v1792 = vadd.f32 0.0, %v1791
        %v1793 = vpop.f32.mrb[0].mxu0
        %v1794 = vpop.f32.mrb[0].mxu0
        %v1795 = vpop.f32.mrb[0].mxu0
        %1796 = vdwg.mxu0
        %v1797 = vld [vmem:[#allocation2] sm:$0xff]
        %v1798 = vld [vmem:[#allocation2 + $0x8] sm:$0xff]
        %v1799 = vld [vmem:[#allocation2 + $0x10] sm:$0xff]
        %v1800 = vld [vmem:[#allocation2 + $0x18] sm:$0xff]
        %v1801 = vld [vmem:[#allocation2 + $0x20] sm:$0xff]
        %v1802 = vld [vmem:[#allocation2 + $0x28] sm:$0xff]
        %v1803 = vld [vmem:[#allocation2 + $0x30] sm:$0xff]
        %v1804 = vld [vmem:[#allocation2 + $0x38] sm:$0xff]
        %v1805 = vld [vmem:[#allocation2 + $0x40] sm:$0xff]
        %v1806 = vld [vmem:[#allocation2 + $0x48] sm:$0xff]
        %v1807 = vld [vmem:[#allocation2 + $0x50] sm:$0xff]
        %v1808 = vadd.f32 %v1797, %v1752
        %v1809 = vadd.f32 %v1798, %v1755
        %v1810 = vadd.f32 %v1799, %v1760
        %v1811 = vadd.f32 %v1800, %v1763
        %v1812 = vadd.f32 %v1801, %v1768
        %v1813 = vadd.f32 %v1802, %v1771
        %v1814 = vadd.f32 %v1803, %v1776
        %v1815 = vadd.f32 %v1804, %v1779
        %v1816 = vadd.f32 %v1805, %v1784
        %v1817 = vadd.f32 %v1806, %v1787
        %v1818 = vadd.f32 %v1807, %v1792
        %1819 = vst.msk [vmem:[#allocation2] sm:$0xff] %vm383, %v1808
        %1820 = vst.msk [vmem:[#allocation2 + $0x8] sm:$0xff] %vm383, %v1809
        %1821 = vst.msk [vmem:[#allocation2 + $0x10] sm:$0xff] %vm383, %v1810
        %1822 = vst.msk [vmem:[#allocation2 + $0x18] sm:$0xff] %vm383, %v1811
        %1823 = vst.msk [vmem:[#allocation2 + $0x20] sm:$0xff] %vm383, %v1812
        %1824 = vst.msk [vmem:[#allocation2 + $0x28] sm:$0xff] %vm383, %v1813
        %1825 = vst.msk [vmem:[#allocation2 + $0x30] sm:$0xff] %vm383, %v1814
        %1826 = vst.msk [vmem:[#allocation2 + $0x38] sm:$0xff] %vm383, %v1815
        %1827 = vst.msk [vmem:[#allocation2 + $0x40] sm:$0xff] %vm383, %v1816
        %1828 = vst.msk [vmem:[#allocation2 + $0x48] sm:$0xff] %vm383, %v1817
        %1829 = vst.msk [vmem:[#allocation2 + $0x50] sm:$0xff] %vm383, %v1818
        %v1830 = vld [vmem:[%s205 + $0x14] sm:$0x8]
        %v1831 = vld [vmem:[%s205 + $0x18] sm:$0xf]
        %v1832 = vld [vmem:[%s205 + $0x1c] sm:$0xf]
        %v1833 = vld [vmem:[%s205 + $0x20] sm:$0xf]
        %v1834 = vld [vmem:[%s205 + $0x24] sm:$0xf]
        %v1835 = vld [vmem:[%s205 + $0x28] sm:$0xf]
        %v1836 = vld [vmem:[%s205 + $0x2c] sm:$0xf]
        %v1837 = vld [vmem:[%s205 + $0x30] sm:$0xf]
        %v1838 = vld [vmem:[%s205 + $0x34] sm:$0xf]
        %v1839 = vld [vmem:[%s205 + $0x38] sm:$0xf]
        %v1840 = vld [vmem:[%s205 + $0x3c] sm:$0xf]
        %v1841 = vld [vmem:[%s205 + $0x40] sm:$0x7]
        %s1842 = scalar_lea.vmem [#allocation6], 32
        %v1843 = vld [vmem:[%s1842] sm:$0xf]
        %v1856 = vunpack.c.l.b16 %v1830
        %v1857 = vunpack.c.l.b16 %v1831
        %v1858 = vunpack.c.l.b16 %v1832
        %v1859 = vunpack.c.l.b16 %v1833
        %v1860 = vunpack.c.l.b16 %v1834
        %v1861 = vunpack.c.l.b16 %v1835
        %v1862 = vunpack.c.l.b16 %v1836
        %v1863 = vunpack.c.l.b16 %v1837
        %v1864 = vunpack.c.l.b16 %v1838
        %v1865 = vunpack.c.l.b16 %v1839
        %v1866 = vunpack.c.l.b16 %v1840
        %v1867 = vunpack.c.l.b16 %v1841
        %v1868 = vpack.c.b16 %v1857, %v1856
        %v1869 = vpack.c.b16 %v1859, %v1858
        %v1870 = vpack.c.b16 %v1861, %v1860
        %v1871 = vpack.c.b16 %v1863, %v1862
        %v1872 = vpack.c.b16 %v1865, %v1864
        %v1873 = vpack.c.b16 %v1867, %v1866
        %v1874 = vrot.slane %v1868, 3
        %v1875 = vrot.slane %v1869, 3
        %v1876 = vsel %vm855, %v1874, %v1875
        %v1877 = vrot.slane %v1870, 3
        %v1878 = vsel %vm855, %v1875, %v1877
        %v1879 = vrot.slane %v1871, 3
        %v1880 = vsel %vm855, %v1877, %v1879
        %v1881 = vrot.slane %v1872, 3
        %v1882 = vsel %vm855, %v1879, %v1881
        %v1883 = vrot.slane %v1873, 3
        %v1884 = vsel %vm855, %v1881, %v1883
        %v1886 = vsel %vm280, %v1876, 0
        %v1889 = vsel %vm280, %v1878, 0
        %v1892 = vsel %vm280, %v1880, 0
        %v1895 = vsel %vm280, %v1882, 0
        %v1898 = vsel %vm280, %v1884, 0
        %v1901 = vsel %vm280, %v1883, 0
        %v1904 = vsel %vm299, %v1843, 0
        %1906 = vmatprep.subr.bf16.mxu0 0
        %1907 = vmatpush1.bf16.msra.mxu0 %v1904
        %1908 = vmatprep.subr.bf16.mxu0 0
        %1909 = vmatpush1.bf16.msra.mxu0 0
        %1910 = vmatprep.subr.bf16.mxu0 0
        %1911 = vmatpush1.bf16.msra.mxu0 0
        %1912 = vmatprep.subr.bf16.mxu0 0
        %1913 = vmatpush1.bf16.msra.mxu0 0
        %1914 = vmatprep.subr.bf16.mxu0 0
        %1915 = vmatpush1.bf16.msra.mxu0 0
        %1916 = vmatprep.subr.bf16.mxu0 0
        %1917 = vmatpush1.bf16.msra.mxu0 0
        %1918 = vmatprep.subr.bf16.mxu0 0
        %1919 = vmatpush1.bf16.msra.mxu0 0
        %1920 = vmatprep.subr.bf16.mxu0 0
        %1921 = vmatpush1.bf16.msra.mxu0 0
        %1922 = vmatprep.subr.bf16.mxu0 0
        %1923 = vmatpush1.bf16.msra.mxu0 0
        %1924 = vmatprep.subr.bf16.mxu0 0
        %1925 = vmatpush1.bf16.msra.mxu0 0
        %1926 = vmatprep.subr.bf16.mxu0 0
        %1927 = vmatpush1.bf16.msra.mxu0 0
        %1928 = vmatprep.subr.bf16.mxu0 0
        %1929 = vmatpush1.bf16.msra.mxu0 0
        %1930 = vmatprep.subr.bf16.mxu0 0
        %1931 = vmatpush1.bf16.msra.mxu0 0
        %1932 = vmatprep.subr.bf16.mxu0 0
        %1933 = vmatpush1.bf16.msra.mxu0 0
        %1934 = vmatprep.subr.bf16.mxu0 0
        %1935 = vmatpush1.bf16.msra.mxu0 0
        %1936 = vmatprep.subr.bf16.mxu0 0
        %1937 = vmatpush1.bf16.msra.mxu0 0
        %1938 = vmatprep.mubr.bf16.mxu0 0
        %1939 = vmatmul.mubr.bf16.gmra.mrb[0].mxu0 %v1886
        %v1940 = vpop.f32.mrb[0].mxu0
        %v1941 = vadd.f32 0.0, %v1940
        %v1942 = vpop.f32.mrb[0].mxu0
        %v1943 = vpop.f32.mrb[0].mxu0
        %v1944 = vadd.f32 0.0, %v1943
        %v1945 = vpop.f32.mrb[0].mxu0
        %1946 = vmatprep.mubr.bf16.mxu0 0
        %1947 = vmatmul.mubr.bf16.gmra.mrb[0].mxu0 %v1889
        %v1948 = vpop.f32.mrb[0].mxu0
        %v1949 = vadd.f32 0.0, %v1948
        %v1950 = vpop.f32.mrb[0].mxu0
        %v1951 = vpop.f32.mrb[0].mxu0
        %v1952 = vadd.f32 0.0, %v1951
        %v1953 = vpop.f32.mrb[0].mxu0
        %1954 = vmatprep.mubr.bf16.mxu0 0
        %1955 = vmatmul.mubr.bf16.gmra.mrb[0].mxu0 %v1892
        %v1956 = vpop.f32.mrb[0].mxu0
        %v1957 = vadd.f32 0.0, %v1956
        %v1958 = vpop.f32.mrb[0].mxu0
        %v1959 = vpop.f32.mrb[0].mxu0
        %v1960 = vadd.f32 0.0, %v1959
        %v1961 = vpop.f32.mrb[0].mxu0
        %1962 = vmatprep.mubr.bf16.mxu0 0
        %1963 = vmatmul.mubr.bf16.gmra.mrb[0].mxu0 %v1895
        %v1964 = vpop.f32.mrb[0].mxu0
        %v1965 = vadd.f32 0.0, %v1964
        %v1966 = vpop.f32.mrb[0].mxu0
        %v1967 = vpop.f32.mrb[0].mxu0
        %v1968 = vadd.f32 0.0, %v1967
        %v1969 = vpop.f32.mrb[0].mxu0
        %1970 = vmatprep.mubr.bf16.mxu0 0
        %1971 = vmatmul.mubr.bf16.gmra.mrb[0].mxu0 %v1898
        %v1972 = vpop.f32.mrb[0].mxu0
        %v1973 = vadd.f32 0.0, %v1972
        %v1974 = vpop.f32.mrb[0].mxu0
        %v1975 = vpop.f32.mrb[0].mxu0
        %v1976 = vadd.f32 0.0, %v1975
        %v1977 = vpop.f32.mrb[0].mxu0
        %1978 = vmatprep.mubr.bf16.mxu0 0
        %1979 = vmatmul.mubr.bf16.gmra.mrb[0].mxu0 %v1901
        %v1980 = vpop.f32.mrb[0].mxu0
        %v1981 = vadd.f32 0.0, %v1980
        %v1982 = vpop.f32.mrb[0].mxu0
        %v1983 = vpop.f32.mrb[0].mxu0
        %v1984 = vpop.f32.mrb[0].mxu0
        %1985 = vdwg.mxu0
        %v1986 = vld [vmem:[#allocation2] sm:$0xff]
        %v1987 = vld [vmem:[#allocation2 + $0x8] sm:$0xff]
        %v1988 = vld [vmem:[#allocation2 + $0x10] sm:$0xff]
        %v1989 = vld [vmem:[#allocation2 + $0x18] sm:$0xff]
        %v1990 = vld [vmem:[#allocation2 + $0x20] sm:$0xff]
        %v1991 = vld [vmem:[#allocation2 + $0x28] sm:$0xff]
        %v1992 = vld [vmem:[#allocation2 + $0x30] sm:$0xff]
        %v1993 = vld [vmem:[#allocation2 + $0x38] sm:$0xff]
        %v1994 = vld [vmem:[#allocation2 + $0x40] sm:$0xff]
        %v1995 = vld [vmem:[#allocation2 + $0x48] sm:$0xff]
        %v1996 = vld [vmem:[#allocation2 + $0x50] sm:$0xff]
        %v1997 = vadd.f32 %v1986, %v1941
        %v1998 = vadd.f32 %v1987, %v1944
        %v1999 = vadd.f32 %v1988, %v1949
        %v2000 = vadd.f32 %v1989, %v1952
        %v2001 = vadd.f32 %v1990, %v1957
        %v2002 = vadd.f32 %v1991, %v1960
        %v2003 = vadd.f32 %v1992, %v1965
        %v2004 = vadd.f32 %v1993, %v1968
        %v2005 = vadd.f32 %v1994, %v1973
        %v2006 = vadd.f32 %v1995, %v1976
        %v2007 = vadd.f32 %v1996, %v1981
        %2008 = vst.msk [vmem:[#allocation2] sm:$0xff] %vm383, %v1997
        %2009 = vst.msk [vmem:[#allocation2 + $0x8] sm:$0xff] %vm383, %v1998
        %2010 = vst.msk [vmem:[#allocation2 + $0x10] sm:$0xff] %vm383, %v1999
        %2011 = vst.msk [vmem:[#allocation2 + $0x18] sm:$0xff] %vm383, %v2000
        %2012 = vst.msk [vmem:[#allocation2 + $0x20] sm:$0xff] %vm383, %v2001
        %2013 = vst.msk [vmem:[#allocation2 + $0x28] sm:$0xff] %vm383, %v2002
        %2014 = vst.msk [vmem:[#allocation2 + $0x30] sm:$0xff] %vm383, %v2003
        %2015 = vst.msk [vmem:[#allocation2 + $0x38] sm:$0xff] %vm383, %v2004
        %2016 = vst.msk [vmem:[#allocation2 + $0x40] sm:$0xff] %vm383, %v2005
        %2017 = vst.msk [vmem:[#allocation2 + $0x48] sm:$0xff] %vm383, %v2006
        %2018 = vst.msk [vmem:[#allocation2 + $0x50] sm:$0xff] %vm383, %v2007
        %v2019 = vld [vmem:[#allocation2] sm:$0xff]
        %v2020 = vld [vmem:[#allocation2 + $0x8] sm:$0xff]
        %v2021 = vld [vmem:[#allocation2 + $0x10] sm:$0xff]
        %v2022 = vld [vmem:[#allocation2 + $0x18] sm:$0xff]
        %v2023 = vld [vmem:[#allocation2 + $0x20] sm:$0xff]
        %v2024 = vld [vmem:[#allocation2 + $0x28] sm:$0xff]
        %v2025 = vld [vmem:[#allocation2 + $0x30] sm:$0xff]
        %v2026 = vld [vmem:[#allocation2 + $0x38] sm:$0xff]
        %v2027 = vld [vmem:[#allocation2 + $0x40] sm:$0xff]
        %v2028 = vld [vmem:[#allocation2 + $0x48] sm:$0xff]
        %v2029 = vld [vmem:[#allocation2 + $0x50] sm:$0xff]
        %v2030 = vld [vmem:[#allocation8] sm:$0x1]
        %v2032 = vlaneseq
        %v2033 = vshrl.u32 %v2032, 7
        %v2034 = vsub.s32 0, %v2033
        %v2035 = vrot.slane %v2030, %v2034
        %v2037 = vadd.f32 %v2019, %v2035
        %v2038 = vadd.f32 %v2020, %v2035
        %v2039 = vadd.f32 %v2021, %v2035
        %v2040 = vadd.f32 %v2022, %v2035
        %v2041 = vadd.f32 %v2023, %v2035
        %v2042 = vadd.f32 %v2024, %v2035
        %v2043 = vadd.f32 %v2025, %v2035
        %v2044 = vadd.f32 %v2026, %v2035
        %v2045 = vadd.f32 %v2027, %v2035
        %v2046 = vadd.f32 %v2028, %v2035
        %v2047 = vadd.f32 %v2029, %v2035
        %vm2048 = vcmp.ge.f32.partialorder %v2037, 0.0
        %vm2049 = vcmp.ge.f32.partialorder %v2038, 0.0
        %vm2050 = vcmp.ge.f32.partialorder %v2039, 0.0
        %vm2051 = vcmp.ge.f32.partialorder %v2040, 0.0
        %vm2052 = vcmp.ge.f32.partialorder %v2041, 0.0
        %vm2053 = vcmp.ge.f32.partialorder %v2042, 0.0
        %vm2054 = vcmp.ge.f32.partialorder %v2043, 0.0
        %vm2055 = vcmp.ge.f32.partialorder %v2044, 0.0
        %vm2056 = vcmp.ge.f32.partialorder %v2045, 0.0
        %vm2057 = vcmp.ge.f32.partialorder %v2046, 0.0
        %vm2058 = vcmp.ge.f32.partialorder %v2047, 0.0
        %v2059 = vmul.f32 %v2037, 0.01
        %v2060 = vmul.f32 %v2038, 0.01
        %v2061 = vmul.f32 %v2039, 0.01
        %v2062 = vmul.f32 %v2040, 0.01
        %v2063 = vmul.f32 %v2041, 0.01
        %v2064 = vmul.f32 %v2042, 0.01
        %v2065 = vmul.f32 %v2043, 0.01
        %v2066 = vmul.f32 %v2044, 0.01
        %v2067 = vmul.f32 %v2045, 0.01
        %v2068 = vmul.f32 %v2046, 0.01
        %v2069 = vmul.f32 %v2047, 0.01
        %v2070 = vsel %vm2048, %v2037, %v2059
        %v2071 = vsel %vm2049, %v2038, %v2060
        %v2072 = vsel %vm2050, %v2039, %v2061
        %v2073 = vsel %vm2051, %v2040, %v2062
        %v2074 = vsel %vm2052, %v2041, %v2063
        %v2075 = vsel %vm2053, %v2042, %v2064
        %v2076 = vsel %vm2054, %v2043, %v2065
        %v2077 = vsel %vm2055, %v2044, %v2066
        %v2078 = vsel %vm2056, %v2045, %v2067
        %v2079 = vsel %vm2057, %v2046, %v2068
        %v2080 = vsel %vm2058, %v2047, %v2069
        %2081 = vst.msk [vmem:[%s235] sm:$0xff] %vm383, %v2070
        %2082 = vst.msk [vmem:[%s235 + $0x8] sm:$0xff] %vm383, %v2071
        %2083 = vst.msk [vmem:[%s235 + $0x10] sm:$0xff] %vm383, %v2072
        %2084 = vst.msk [vmem:[%s235 + $0x18] sm:$0xff] %vm383, %v2073
        %2085 = vst.msk [vmem:[%s235 + $0x20] sm:$0xff] %vm383, %v2074
        %2086 = vst.msk [vmem:[%s235 + $0x28] sm:$0xff] %vm383, %v2075
        %2087 = vst.msk [vmem:[%s235 + $0x30] sm:$0xff] %vm383, %v2076
        %2088 = vst.msk [vmem:[%s235 + $0x38] sm:$0xff] %vm383, %v2077
        %2089 = vst.msk [vmem:[%s235 + $0x40] sm:$0xff] %vm383, %v2078
        %2090 = vst.msk [vmem:[%s235 + $0x48] sm:$0xff] %vm383, %v2079
        %2091 = vst.msk [vmem:[%s235 + $0x50] sm:$0xff] %vm383, %v2080
        %s2092 = sand.u32 %s115, 1
        %s2093 = scalar_lea.sflag [#allocation5], %s2092
        %s2094 = sand.u32 %s115, 1
        %s2095 = smul.addr %s2094, 88
        %s2096 = scalar_lea.vmem [#allocation9], %s2095
        // Predicated region
        $region45: #{tpu_custom_call.1} parent=31 // pred_check
          %p2097 = pneg %p125
        $region46: #{tpu_custom_call.1} parent=31 // pred_check_branch
          %2099 = sbr.rel (%p2097) target = $region48
        $region47: #{tpu_custom_call.1} parent=31 // pred_region
          %s2100 = smul.u32 11, %s26
          %s2102 = ssub.s32 1408, 1408
          %2103 = vsyncadd %s2093, %s2102
          %s2104 = smul.addr %s25, 55
          %s2105 = sadd.s32 %s2100, %s2104
          %s2106 = smul.addr %s2105, 128
          %s2107 = scalar_lea.hbm %s3, %s2106
          %s2108 = sshll.u32 %s2096, 4
          %s2109 = int_to_ptr.vmem [resolvable:$true] %s2108
          %2114 = dma.vmem_to_hbm [thread:$0]  %s2109, 1408, %s2107, %s2093, 128, 128, 8
        $region48: #{tpu_custom_call.1} parent=31 // pred_fallthru
          _
      $region32: #{tpu_custom_call.1} parent=5 // pred_fallthru
        _
      %p2115 = scmp.le.s32.totalorder 2, %s16
      // Predicated region
      $region49: #{tpu_custom_call.1} parent=5 // pred_check
        %p2116 = pneg %p2115
      $region50: #{tpu_custom_call.1} parent=5 // pred_check_branch
        %2118 = sbr.rel (%p2116) target = $region52
      $region51: #{tpu_custom_call.1} parent=5 // pred_region
        %s2119 = ssub.s32 %s16, 2
        // Predicated region
        $region53: #{tpu_custom_call.1} parent=51 // pred_check
          %p2120 = pneg %p131
        $region54: #{tpu_custom_call.1} parent=51 // pred_check_branch
          %2122 = sbr.rel (%p2120) target = $region56
        $region55: #{tpu_custom_call.1} parent=51 // pred_region
          %s2123 = sand.u32 %s116, 1
          %s2124 = scalar_lea.sflag [#allocation5], %s2123
          %s2125 = sand.u32 %s116, 1
          %s2126 = smul.addr %s2125, 88
          %s2127 = scalar_lea.vmem [#allocation9], %s2126
          %2128 = dma.done %s2124, 1408
        $region56: #{tpu_custom_call.1} parent=51 // pred_fallthru
          _
      $region52: #{tpu_custom_call.1} parent=5 // pred_fallthru
        _
    $region6: #{tpu_custom_call.1} parent=1 // loop_footer
      %s20 = sadd.s32 1, %s16
    $region7: #{tpu_custom_call.1} parent=1 // loop_footer_branch
      %15 = sbr.rel target = $region3
    $region8: #{tpu_custom_call.1} parent=1 // loop_exit
      _
    %2129 = vsyncpa [#allocation4], 1
    %s2130 = scalar_lea.sflag [#allocation4], 1
    %2131 = vsyncpa %s2130, 1
    %2132 = vsyncpa [#allocation7], 1
    %2133 = vsyncpa [#allocation5], 1
    %s2134 = scalar_lea.sflag [#allocation5], 1
    %2135 = vsyncpa %s2134, 1

</llo_original>
